<compile_context>
chip_gen: v5e
topology: v5e:2x2
jax: 0.10.0
libtpu: 0.0.40
codegen_flags: <defaults>
</compile_context>

<pallas_src>
import jax
import jax.numpy as jnp
from jax import lax
from jax.experimental import pallas as pl
from jax.experimental.pallas import tpu as pltpu

HIDDEN = 32
EMBED = 128
_GATE_PERM = (0, 1, 3, 2)   # PyTorch order [i, f, g, o] -> kernel order [i, f, o, g]


def _sigmoid(x):
    # exp goes to the EUP slot; exact reciprocal keeps f32 parity with jax.nn.sigmoid.
    return pl.reciprocal(1.0 + jnp.exp(-x), approx=False)


def _bilstm_kernel(gin_ref, len_ref, whh_ref, wfc_ref, bfc_ref, out_ref, h_ref, c_ref):
    tT = gin_ref.shape[0]
    H = HIDDEN
    H2 = 2 * H                       # fused fwd+bwd state width (64)
    t_blk = pl.program_id(1)
    n_t = pl.num_programs(1)
    T_total = tT * n_t               # padded sequence length (int32 scalar)

    @pl.when(t_blk == 0)
    def _():
        # Zero initial state (required for packed-sequence equivalence, see header).
        h_ref[...] = jnp.zeros_like(h_ref)
        c_ref[...] = jnp.zeros_like(c_ref)

    whh = whh_ref[...]               # (2H, 8H) block-diagonal recurrent weight (hoisted)
    len_col = len_ref[...]           # (bB, 1) int32 lengths for this batch block
    lane = lax.broadcasted_iota(jnp.int32, (1, H2), 1)   # hoisted lane index 0..2H-1
    base_t = t_blk * tT

    def step(s, carry):
        h, c = carry
        # One MXU pass covers both directions' recurrent projection on v6e/v7x
        # ((bB,64)x(64,256)); on v5e's 4x128^2 MXU it is two 128-wide column passes
        # over the half-zero block-diagonal weight -- still correct, just two pushes.
        gates = gin_ref[s].astype(jnp.float32) + jnp.dot(
            h, whh, preferred_element_type=jnp.float32)
        # Gate layout: [ i | f | o | g ], each 2H wide ([fwd | bwd] inside a gate),
        # matching the state layout h = [h_fwd | h_bwd].  Sigmoid only on the
        # contiguous first 3*2H lanes; tanh on the last 2H.
        sig = _sigmoid(gates[:, :3 * H2])
        i_g = sig[:, 0 * H2:1 * H2]
        f_g = sig[:, 1 * H2:2 * H2]
        o_g = sig[:, 2 * H2:3 * H2]
        g_g = jnp.tanh(gates[:, 3 * H2:4 * H2])
        c_new = f_g * c + i_g * g_g
        h_new = o_g * jnp.tanh(c_new)
        # Packed-sequence freeze, computed in-kernel: fwd half valid iff t < len,
        # bwd half valid iff (T_total-1-t) < len (the time-reversed position).
        t_glob = base_t + s
        t_eff = jnp.where(lane < H, t_glob, T_total - 1 - t_glob)   # (1, 2H) int32
        m = t_eff < len_col                                         # (bB, 2H) bool
        h = jnp.where(m, h_new, h)
        c = jnp.where(m, c_new, c)
        return h, c

    h, c = lax.fori_loop(0, tT, step, (h_ref[...], c_ref[...]), unroll=4)
    h_ref[...] = h
    c_ref[...] = c

    @pl.when(t_blk == n_t - 1)
    def _():
        # fc on cat([h_fwd, h_bwd]) == h: lane reduction instead of an N=1 matmul.
        logits = jnp.sum(h * wfc_ref[...], axis=1, keepdims=True) + bfc_ref[0, 0]
        out_ref[...] = _sigmoid(logits)


def init_params(key, lib_sz):
    ks = jax.random.split(key, 10)
    s = 0.1
    p = {}
    p["embedding"] = jax.random.normal(ks[0], (lib_sz + 1, EMBED), jnp.float32) * s
    # PyTorch LSTM weight_ih is (4H, E) / weight_hh is (4H, H); stored transposed for x @ W.
    p["wih_f"] = jax.random.normal(ks[1], (EMBED, 4 * HIDDEN), jnp.float32) * s
    p["whh_f"] = jax.random.normal(ks[2], (HIDDEN, 4 * HIDDEN), jnp.float32) * s
    p["b_f"] = jax.random.normal(ks[3], (1, 4 * HIDDEN), jnp.float32) * s   # b_ih + b_hh combined
    p["wih_b"] = jax.random.normal(ks[4], (EMBED, 4 * HIDDEN), jnp.float32) * s
    p["whh_b"] = jax.random.normal(ks[5], (HIDDEN, 4 * HIDDEN), jnp.float32) * s
    p["b_b"] = jax.random.normal(ks[6], (1, 4 * HIDDEN), jnp.float32) * s
    # fc = Linear(64, 1); its single weight row split into fwd/bwd halves (1, 32) each.
    p["wfc_f"] = jax.random.normal(ks[7], (1, HIDDEN), jnp.float32) * s
    p["wfc_b"] = jax.random.normal(ks[8], (1, HIDDEN), jnp.float32) * s
    p["bfc"] = jax.random.normal(ks[9], (1, 1), jnp.float32) * s
    return p


def fold_params(p):
    """Precompute kernel-ready tensors (done once per model, not per token):
       - embedding pre-projected through W_ih with bias folded in (gate order [i,f,o,g]),
       - block-diagonal fused recurrent weight (2H, 8H), gate-major / direction-minor,
       - concatenated fc weight (1, 2H)."""
    H = HIDDEN
    perm = jnp.array(_GATE_PERM)

    def reorder(w):                                   # permute (..., 4H) gate blocks
        lead = w.shape[:-1]
        return w.reshape(*lead, 4, H)[..., perm, :].reshape(*lead, 4 * H)

    table_f = reorder(p["embedding"] @ p["wih_f"] + p["b_f"])    # (V+1, 4H)
    table_b = reorder(p["embedding"] @ p["wih_b"] + p["b_b"])
    wf = reorder(p["whh_f"]).reshape(H, 4, H)
    wb = reorder(p["whh_b"]).reshape(H, 4, H)
    z = jnp.zeros_like(wf)
    top = jnp.stack([wf, z], axis=2)                  # rows 0:H  -> fwd columns only
    bot = jnp.stack([z, wb], axis=2)                  # rows H:2H -> bwd columns only
    whh_c = jnp.concatenate([top, bot], axis=0).reshape(2 * H, 8 * H)   # (2H, 8H)
    wfc_c = jnp.concatenate([p["wfc_f"], p["wfc_b"]], axis=1)           # (1, 2H)
    return {"table_f": table_f, "table_b": table_b,
            "whh": whh_c, "wfc": wfc_c, "bfc": p["bfc"]}


def model_forward(folded, x_tokens, text_lengths, *, bB=16, tT=8):
    """x_tokens: (B, T) int32 token ids; text_lengths: (B,) int (sorted descending)."""
    B, T = x_tokens.shape
    H = HIDDEN
    B_pad = pl.cdiv(B, bB) * bB
    T_pad = pl.cdiv(T, tT) * tT
    x_p = jnp.pad(x_tokens, ((0, B_pad - B), (0, T_pad - T)))            # pad tokens with id 0
    len_p = jnp.pad(text_lengths.astype(jnp.int32), (0, B_pad - B))      # padded rows: length 0
    len_col = len_p[:, None]                                             # (B_pad, 1) int32

    # Gather pre-projected gate inputs (the W_ih matmul + bias already live in the table).
    gx_f = jnp.take(folded["table_f"], x_p, axis=0).transpose(1, 0, 2)        # (T_pad, B_pad, 4H)
    gx_b = jnp.take(folded["table_b"], x_p, axis=0).transpose(1, 0, 2)[::-1]  # time-reversed
    # Interleave into (T_pad, B_pad, 8H): [i_f,i_b | f_f,f_b | o_f,o_b | g_f,g_b]; store bf16.
    gin = jnp.concatenate(
        [gx_f.reshape(T_pad, B_pad, 4, 1, H), gx_b.reshape(T_pad, B_pad, 4, 1, H)], axis=3
    ).reshape(T_pad, B_pad, 8 * H).astype(jnp.bfloat16)

    grid = (B_pad // bB, T_pad // tT)        # batch blocks (parallel), time blocks (arbitrary)
    out = pl.pallas_call(
        _bilstm_kernel,
        out_shape=jax.ShapeDtypeStruct((B_pad, 1), jnp.float32),
        grid_spec=pltpu.PrefetchScalarGridSpec(
            num_scalar_prefetch=0,
            grid=grid,
            in_specs=[
                pl.BlockSpec((tT, bB, 8 * H), lambda b, t: (t, b, 0)),      # streamed gin chunk
                pl.BlockSpec((bB, 1), lambda b, t: (b, 0)),                  # lengths column
                pl.BlockSpec((2 * H, 8 * H), lambda b, t: (0, 0)),           # fused recurrent W
                pl.BlockSpec((1, 2 * H), lambda b, t: (0, 0)),               # fc weight row
                pl.BlockSpec(memory_space=pltpu.MemorySpace.SMEM),           # fc bias scalar
            ],
            out_specs=pl.BlockSpec((bB, 1), lambda b, t: (b, 0)),            # resident across t
            scratch_shapes=[pltpu.VMEM((bB, 2 * H), jnp.float32),            # h state
                            pltpu.VMEM((bB, 2 * H), jnp.float32)],           # c state
        ),
        compiler_params=pltpu.CompilerParams(
            dimension_semantics=("parallel", "arbitrary")),
    )(gin, len_col, folded["whh"], folded["wfc"], folded["bfc"])
    return out[:B]


def reference_forward(params, x_tokens, text_lengths):
    """Pure-JAX reference with identical packed-LSTM semantics (for correctness check)."""
    B, T = x_tokens.shape
    xe = jnp.take(params["embedding"], x_tokens, axis=0).transpose(1, 0, 2)
    mask = (jnp.arange(T)[:, None] < text_lengths[None, :]).astype(jnp.float32)[..., None]
    H = HIDDEN

    def run(time_indices, wih, whh, b):
        h = jnp.zeros((B, H), jnp.float32)
        c = jnp.zeros((B, H), jnp.float32)
        for t in time_indices:
            gates = xe[t] @ wih + h @ whh + b
            i = jax.nn.sigmoid(gates[:, 0:H])
            f = jax.nn.sigmoid(gates[:, H:2 * H])
            g = jnp.tanh(gates[:, 2 * H:3 * H])
            o = jax.nn.sigmoid(gates[:, 3 * H:4 * H])
            c_new = f * c + i * g
            h_new = o * jnp.tanh(c_new)
            m = mask[t]
            h = m * h_new + (1 - m) * h
            c = m * c_new + (1 - m) * c
        return h

    hf = run(range(T), params["wih_f"], params["whh_f"], params["b_f"])
    hb = run(range(T - 1, -1, -1), params["wih_b"], params["whh_b"], params["b_b"])
    logits = ((hf * params["wfc_f"]).sum(1, keepdims=True)
              + (hb * params["wfc_b"]).sum(1, keepdims=True)
              + params["bfc"])
    return jax.nn.sigmoid(logits)


if __name__ == "__main__":
    key = jax.random.PRNGKey(0)
    lib_sz, nclass = 50, 2   # nclass is unused by the torch module's layers
    B, T = 2, 10

    kp, kx = jax.random.split(key)
    params = init_params(kp, lib_sz)
    folded = fold_params(params)
    x = jax.random.randint(kx, (B, T), 0, lib_sz + 1, dtype=jnp.int32)
    text_lengths = jnp.array([10, 6], dtype=jnp.int32)  # sorted descending, as pack_padded requires

    # tT=4 -> 3 time chunks (with 2 padded steps), exercising cross-chunk state carry.
    fwd = jax.jit(lambda f, xx, ll: model_forward(f, xx, ll, bB=16, tT=4))
    out = jax.block_until_ready(fwd(folded, x, text_lengths))

    ref = reference_forward(params, x, text_lengths)
    assert out.shape == (B, 1)
    # bf16 gin storage -> loosened tolerance vs the all-f32 reference.
    assert jnp.allclose(out, ref, atol=1e-2, rtol=1e-2), (out, ref)
    print("KERNEL_OK")
</pallas_src>

<mosaic_0001>
module attributes {stable_mosaic.version = 11 : i64} {
  func.func @_bilstm_kernel(%arg0: i32, %arg1: i32, %arg2: memref<4x16x256xbf16, #tpu.memory_space<vmem>>, %arg3: memref<16x1xi32, #tpu.memory_space<vmem>>, %arg4: memref<64x256xf32, #tpu.memory_space<vmem>>, %arg5: memref<1x64xf32, #tpu.memory_space<vmem>>, %arg6: memref<1x1xf32, #tpu.memory_space<smem>>, %arg7: memref<16x1xf32, #tpu.memory_space<vmem>>, %arg8: memref<16x64xf32, #tpu.memory_space<vmem>>, %arg9: memref<16x64xf32, #tpu.memory_space<vmem>>) attributes {dimension_semantics = [#tpu.dimension_semantics<parallel>, #tpu.dimension_semantics<arbitrary>], iteration_bounds = array<i64: 1, 3>, scalar_prefetch = 0 : i64, scratch_operands = 2 : i64, tpu.core_type = #tpu.core_type<tc>, window_params = [{transform_indices = @transform_0, window_bounds = array<i64: 4, 16, 256>}, {transform_indices = @transform_1, window_bounds = array<i64: 16, 1>}, {pipeline_mode = #tpu.pipeline_mode<synchronous>, transform_indices = @transform_2, window_bounds = array<i64: 64, 256>}, {pipeline_mode = #tpu.pipeline_mode<synchronous>, transform_indices = @transform_3, window_bounds = array<i64: 1, 64>}, {transform_indices = @transform_4, window_bounds = array<i64: 1, 1>}, {transform_indices = @transform_5, window_bounds = array<i64: 16, 1>}]} {
    %c0_i32 = arith.constant 0 : i32
    %0 = arith.cmpi eq, %arg1, %c0_i32 : i32
    %1 = arith.extui %0 : i1 to i32
    %c0_i32_0 = arith.constant 0 : i32
    %2 = arith.cmpi ne, %1, %c0_i32_0 : i32
    scf.if %2 {
      %cst_41 = arith.constant 0.000000e+00 : f32
      %154 = vector.broadcast %cst_41 : f32 to vector<16x64xf32>
      %c0_42 = arith.constant 0 : index
      %c0_43 = arith.constant 0 : index
      %155 = vector.load %arg8[%c0_42, %c0_43] : memref<16x64xf32, #tpu.memory_space<vmem>>, vector<16x64xf32>
      tpu.vector_store %arg8[%c0_42, %c0_43], %154 {strides = array<i32>} : memref<16x64xf32, #tpu.memory_space<vmem>>, vector<16x64xf32>,
      %cst_44 = arith.constant 0.000000e+00 : f32
      %156 = vector.broadcast %cst_44 : f32 to vector<16x64xf32>
      %c0_45 = arith.constant 0 : index
      %c0_46 = arith.constant 0 : index
      %157 = vector.load %arg9[%c0_45, %c0_46] : memref<16x64xf32, #tpu.memory_space<vmem>>, vector<16x64xf32>
      tpu.vector_store %arg9[%c0_45, %c0_46], %156 {strides = array<i32>} : memref<16x64xf32, #tpu.memory_space<vmem>>, vector<16x64xf32>,
    } else {
    }
    %c0 = arith.constant 0 : index
    %c0_1 = arith.constant 0 : index
    %3 = vector.load %arg4[%c0, %c0_1] : memref<64x256xf32, #tpu.memory_space<vmem>>, vector<64x256xf32>
    %c0_2 = arith.constant 0 : index
    %c0_3 = arith.constant 0 : index
    %4 = vector.load %arg3[%c0_2, %c0_3] : memref<16x1xi32, #tpu.memory_space<vmem>>, vector<16x1xi32>
    %5 = tpu.iota {dimensions = array<i32: 1>} : vector<1x64xi32>
    %c4_i32 = arith.constant 4 : i32
    %6 = arith.muli %arg1, %c4_i32 : i32
    %c0_4 = arith.constant 0 : index
    %c0_5 = arith.constant 0 : index
    %7 = vector.load %arg8[%c0_4, %c0_5] : memref<16x64xf32, #tpu.memory_space<vmem>>, vector<16x64xf32>
    %c0_6 = arith.constant 0 : index
    %c0_7 = arith.constant 0 : index
    %8 = vector.load %arg9[%c0_6, %c0_7] : memref<16x64xf32, #tpu.memory_space<vmem>>, vector<16x64xf32>
    %c0_i32_8 = arith.constant 0 : i32
    %9 = arith.index_cast %c0_i32_8 : i32 to index
    %c0_9 = arith.constant 0 : index
    %c0_10 = arith.constant 0 : index
    %10 = vector.load %arg2[%9, %c0_9, %c0_10] : memref<4x16x256xbf16, #tpu.memory_space<vmem>>, vector<1x16x256xbf16>
    %11 = vector.shape_cast %10 : vector<1x16x256xbf16> to vector<16x256xbf16>
    %12 = arith.extf %11 : vector<16x256xbf16> to vector<16x256xf32>
    %cst = arith.constant dense<0.000000e+00> : vector<16x256xf32>
    %13 = tpu.matmul %7, %3, %cst {dimension_numbers = #tpu.dot_dimension_numbers<[1], [0], [0], [1], [0, 0, 1, 1], [], []>} : vector<16x64xf32>, vector<64x256xf32>, vector<16x256xf32> -> vector<16x256xf32>
    %14 = arith.addf %12, %13 : vector<16x256xf32>
    %15 = vector.extract_strided_slice %14 {offsets = [0, 0], sizes = [16, 192], strides = [1, 1]} : vector<16x256xf32> to vector<16x192xf32>
    %cst_11 = arith.constant 0.000000e+00 : f32
    %16 = vector.broadcast %cst_11 : f32 to vector<16x192xf32>
    %17 = arith.subf %16, %15 : vector<16x192xf32>
    %18 = math.exp %17 : vector<16x192xf32>
    %cst_12 = arith.constant 1.000000e+00 : f32
    %19 = vector.broadcast %cst_12 : f32 to vector<16x192xf32>
    %20 = arith.addf %19, %18 : vector<16x192xf32>
    %21 = tpu.reciprocal %20 : vector<16x192xf32> -> vector<16x192xf32>
    %22 = vector.extract_strided_slice %21 {offsets = [0, 0], sizes = [16, 64], strides = [1, 1]} : vector<16x192xf32> to vector<16x64xf32>
    %23 = vector.extract_strided_slice %21 {offsets = [0, 64], sizes = [16, 64], strides = [1, 1]} : vector<16x192xf32> to vector<16x64xf32>
    %24 = vector.extract_strided_slice %21 {offsets = [0, 128], sizes = [16, 64], strides = [1, 1]} : vector<16x192xf32> to vector<16x64xf32>
    %25 = vector.extract_strided_slice %14 {offsets = [0, 192], sizes = [16, 64], strides = [1, 1]} : vector<16x256xf32> to vector<16x64xf32>
    %26 = math.tanh %25 : vector<16x64xf32>
    %27 = arith.mulf %23, %8 : vector<16x64xf32>
    %28 = arith.mulf %22, %26 : vector<16x64xf32>
    %29 = arith.addf %27, %28 : vector<16x64xf32>
    %30 = math.tanh %29 : vector<16x64xf32>
    %31 = arith.mulf %24, %30 : vector<16x64xf32>
    %32 = arith.addi %6, %c0_i32_8 : i32
    %c32_i32 = arith.constant 32 : i32
    %33 = vector.broadcast %c32_i32 : i32 to vector<1x64xi32>
    %34 = arith.cmpi slt, %5, %33 : vector<1x64xi32>
    %c11_i32 = arith.constant 11 : i32
    %35 = arith.subi %c11_i32, %32 : i32
    %36 = vector.broadcast %32 : i32 to vector<1x64xi32>
    %37 = vector.broadcast %35 : i32 to vector<1x64xi32>
    %38 = arith.select %34, %36, %37 : vector<1x64xi1>, vector<1x64xi32>
    %39 = vector.broadcast %38 : vector<1x64xi32> to vector<16x64xi32>
    %40 = vector.broadcast %4 : vector<16x1xi32> to vector<16x64xi32>
    %41 = arith.cmpi slt, %39, %40 : vector<16x64xi32>
    %42 = arith.select %41, %31, %7 : vector<16x64xi1>, vector<16x64xf32>
    %43 = arith.select %41, %29, %8 : vector<16x64xi1>, vector<16x64xf32>
    %c1_i32 = arith.constant 1 : i32
    %44 = arith.index_cast %c1_i32 : i32 to index
    %c0_13 = arith.constant 0 : index
    %c0_14 = arith.constant 0 : index
    %45 = vector.load %arg2[%44, %c0_13, %c0_14] : memref<4x16x256xbf16, #tpu.memory_space<vmem>>, vector<1x16x256xbf16>
    %46 = vector.shape_cast %45 : vector<1x16x256xbf16> to vector<16x256xbf16>
    %47 = arith.extf %46 : vector<16x256xbf16> to vector<16x256xf32>
    %cst_15 = arith.constant dense<0.000000e+00> : vector<16x256xf32>
    %48 = tpu.matmul %42, %3, %cst_15 {dimension_numbers = #tpu.dot_dimension_numbers<[1], [0], [0], [1], [0, 0, 1, 1], [], []>} : vector<16x64xf32>, vector<64x256xf32>, vector<16x256xf32> -> vector<16x256xf32>
    %49 = arith.addf %47, %48 : vector<16x256xf32>
    %50 = vector.extract_strided_slice %49 {offsets = [0, 0], sizes = [16, 192], strides = [1, 1]} : vector<16x256xf32> to vector<16x192xf32>
    %cst_16 = arith.constant 0.000000e+00 : f32
    %51 = vector.broadcast %cst_16 : f32 to vector<16x192xf32>
    %52 = arith.subf %51, %50 : vector<16x192xf32>
    %53 = math.exp %52 : vector<16x192xf32>
    %cst_17 = arith.constant 1.000000e+00 : f32
    %54 = vector.broadcast %cst_17 : f32 to vector<16x192xf32>
    %55 = arith.addf %54, %53 : vector<16x192xf32>
    %56 = tpu.reciprocal %55 : vector<16x192xf32> -> vector<16x192xf32>
    %57 = vector.extract_strided_slice %56 {offsets = [0, 0], sizes = [16, 64], strides = [1, 1]} : vector<16x192xf32> to vector<16x64xf32>
    %58 = vector.extract_strided_slice %56 {offsets = [0, 64], sizes = [16, 64], strides = [1, 1]} : vector<16x192xf32> to vector<16x64xf32>
    %59 = vector.extract_strided_slice %56 {offsets = [0, 128], sizes = [16, 64], strides = [1, 1]} : vector<16x192xf32> to vector<16x64xf32>
    %60 = vector.extract_strided_slice %49 {offsets = [0, 192], sizes = [16, 64], strides = [1, 1]} : vector<16x256xf32> to vector<16x64xf32>
    %61 = math.tanh %60 : vector<16x64xf32>
    %62 = arith.mulf %58, %43 : vector<16x64xf32>
    %63 = arith.mulf %57, %61 : vector<16x64xf32>
    %64 = arith.addf %62, %63 : vector<16x64xf32>
    %65 = math.tanh %64 : vector<16x64xf32>
    %66 = arith.mulf %59, %65 : vector<16x64xf32>
    %67 = arith.addi %6, %c1_i32 : i32
    %c32_i32_18 = arith.constant 32 : i32
    %68 = vector.broadcast %c32_i32_18 : i32 to vector<1x64xi32>
    %69 = arith.cmpi slt, %5, %68 : vector<1x64xi32>
    %c11_i32_19 = arith.constant 11 : i32
    %70 = arith.subi %c11_i32_19, %67 : i32
    %71 = vector.broadcast %67 : i32 to vector<1x64xi32>
    %72 = vector.broadcast %70 : i32 to vector<1x64xi32>
    %73 = arith.select %69, %71, %72 : vector<1x64xi1>, vector<1x64xi32>
    %74 = vector.broadcast %73 : vector<1x64xi32> to vector<16x64xi32>
    %75 = vector.broadcast %4 : vector<16x1xi32> to vector<16x64xi32>
    %76 = arith.cmpi slt, %74, %75 : vector<16x64xi32>
    %77 = arith.select %76, %66, %42 : vector<16x64xi1>, vector<16x64xf32>
    %78 = arith.select %76, %64, %43 : vector<16x64xi1>, vector<16x64xf32>
    %c2_i32 = arith.constant 2 : i32
    %79 = arith.index_cast %c2_i32 : i32 to index
    %c0_20 = arith.constant 0 : index
    %c0_21 = arith.constant 0 : index
    %80 = vector.load %arg2[%79, %c0_20, %c0_21] : memref<4x16x256xbf16, #tpu.memory_space<vmem>>, vector<1x16x256xbf16>
    %81 = vector.shape_cast %80 : vector<1x16x256xbf16> to vector<16x256xbf16>
    %82 = arith.extf %81 : vector<16x256xbf16> to vector<16x256xf32>
    %cst_22 = arith.constant dense<0.000000e+00> : vector<16x256xf32>
    %83 = tpu.matmul %77, %3, %cst_22 {dimension_numbers = #tpu.dot_dimension_numbers<[1], [0], [0], [1], [0, 0, 1, 1], [], []>} : vector<16x64xf32>, vector<64x256xf32>, vector<16x256xf32> -> vector<16x256xf32>
    %84 = arith.addf %82, %83 : vector<16x256xf32>
    %85 = vector.extract_strided_slice %84 {offsets = [0, 0], sizes = [16, 192], strides = [1, 1]} : vector<16x256xf32> to vector<16x192xf32>
    %cst_23 = arith.constant 0.000000e+00 : f32
    %86 = vector.broadcast %cst_23 : f32 to vector<16x192xf32>
    %87 = arith.subf %86, %85 : vector<16x192xf32>
    %88 = math.exp %87 : vector<16x192xf32>
    %cst_24 = arith.constant 1.000000e+00 : f32
    %89 = vector.broadcast %cst_24 : f32 to vector<16x192xf32>
    %90 = arith.addf %89, %88 : vector<16x192xf32>
    %91 = tpu.reciprocal %90 : vector<16x192xf32> -> vector<16x192xf32>
    %92 = vector.extract_strided_slice %91 {offsets = [0, 0], sizes = [16, 64], strides = [1, 1]} : vector<16x192xf32> to vector<16x64xf32>
    %93 = vector.extract_strided_slice %91 {offsets = [0, 64], sizes = [16, 64], strides = [1, 1]} : vector<16x192xf32> to vector<16x64xf32>
    %94 = vector.extract_strided_slice %91 {offsets = [0, 128], sizes = [16, 64], strides = [1, 1]} : vector<16x192xf32> to vector<16x64xf32>
    %95 = vector.extract_strided_slice %84 {offsets = [0, 192], sizes = [16, 64], strides = [1, 1]} : vector<16x256xf32> to vector<16x64xf32>
    %96 = math.tanh %95 : vector<16x64xf32>
    %97 = arith.mulf %93, %78 : vector<16x64xf32>
    %98 = arith.mulf %92, %96 : vector<16x64xf32>
    %99 = arith.addf %97, %98 : vector<16x64xf32>
    %100 = math.tanh %99 : vector<16x64xf32>
    %101 = arith.mulf %94, %100 : vector<16x64xf32>
    %102 = arith.addi %6, %c2_i32 : i32
    %c32_i32_25 = arith.constant 32 : i32
    %103 = vector.broadcast %c32_i32_25 : i32 to vector<1x64xi32>
    %104 = arith.cmpi slt, %5, %103 : vector<1x64xi32>
    %c11_i32_26 = arith.constant 11 : i32
    %105 = arith.subi %c11_i32_26, %102 : i32
    %106 = vector.broadcast %102 : i32 to vector<1x64xi32>
    %107 = vector.broadcast %105 : i32 to vector<1x64xi32>
    %108 = arith.select %104, %106, %107 : vector<1x64xi1>, vector<1x64xi32>
    %109 = vector.broadcast %108 : vector<1x64xi32> to vector<16x64xi32>
    %110 = vector.broadcast %4 : vector<16x1xi32> to vector<16x64xi32>
    %111 = arith.cmpi slt, %109, %110 : vector<16x64xi32>
    %112 = arith.select %111, %101, %77 : vector<16x64xi1>, vector<16x64xf32>
    %113 = arith.select %111, %99, %78 : vector<16x64xi1>, vector<16x64xf32>
    %c3_i32 = arith.constant 3 : i32
    %114 = arith.index_cast %c3_i32 : i32 to index
    %c0_27 = arith.constant 0 : index
    %c0_28 = arith.constant 0 : index
    %115 = vector.load %arg2[%114, %c0_27, %c0_28] : memref<4x16x256xbf16, #tpu.memory_space<vmem>>, vector<1x16x256xbf16>
    %116 = vector.shape_cast %115 : vector<1x16x256xbf16> to vector<16x256xbf16>
    %117 = arith.extf %116 : vector<16x256xbf16> to vector<16x256xf32>
    %cst_29 = arith.constant dense<0.000000e+00> : vector<16x256xf32>
    %118 = tpu.matmul %112, %3, %cst_29 {dimension_numbers = #tpu.dot_dimension_numbers<[1], [0], [0], [1], [0, 0, 1, 1], [], []>} : vector<16x64xf32>, vector<64x256xf32>, vector<16x256xf32> -> vector<16x256xf32>
    %119 = arith.addf %117, %118 : vector<16x256xf32>
    %120 = vector.extract_strided_slice %119 {offsets = [0, 0], sizes = [16, 192], strides = [1, 1]} : vector<16x256xf32> to vector<16x192xf32>
    %cst_30 = arith.constant 0.000000e+00 : f32
    %121 = vector.broadcast %cst_30 : f32 to vector<16x192xf32>
    %122 = arith.subf %121, %120 : vector<16x192xf32>
    %123 = math.exp %122 : vector<16x192xf32>
    %cst_31 = arith.constant 1.000000e+00 : f32
    %124 = vector.broadcast %cst_31 : f32 to vector<16x192xf32>
    %125 = arith.addf %124, %123 : vector<16x192xf32>
    %126 = tpu.reciprocal %125 : vector<16x192xf32> -> vector<16x192xf32>
    %127 = vector.extract_strided_slice %126 {offsets = [0, 0], sizes = [16, 64], strides = [1, 1]} : vector<16x192xf32> to vector<16x64xf32>
    %128 = vector.extract_strided_slice %126 {offsets = [0, 64], sizes = [16, 64], strides = [1, 1]} : vector<16x192xf32> to vector<16x64xf32>
    %129 = vector.extract_strided_slice %126 {offsets = [0, 128], sizes = [16, 64], strides = [1, 1]} : vector<16x192xf32> to vector<16x64xf32>
    %130 = vector.extract_strided_slice %119 {offsets = [0, 192], sizes = [16, 64], strides = [1, 1]} : vector<16x256xf32> to vector<16x64xf32>
    %131 = math.tanh %130 : vector<16x64xf32>
    %132 = arith.mulf %128, %113 : vector<16x64xf32>
    %133 = arith.mulf %127, %131 : vector<16x64xf32>
    %134 = arith.addf %132, %133 : vector<16x64xf32>
    %135 = math.tanh %134 : vector<16x64xf32>
    %136 = arith.mulf %129, %135 : vector<16x64xf32>
    %137 = arith.addi %6, %c3_i32 : i32
    %c32_i32_32 = arith.constant 32 : i32
    %138 = vector.broadcast %c32_i32_32 : i32 to vector<1x64xi32>
    %139 = arith.cmpi slt, %5, %138 : vector<1x64xi32>
    %c11_i32_33 = arith.constant 11 : i32
    %140 = arith.subi %c11_i32_33, %137 : i32
    %141 = vector.broadcast %137 : i32 to vector<1x64xi32>
    %142 = vector.broadcast %140 : i32 to vector<1x64xi32>
    %143 = arith.select %139, %141, %142 : vector<1x64xi1>, vector<1x64xi32>
    %144 = vector.broadcast %143 : vector<1x64xi32> to vector<16x64xi32>
    %145 = vector.broadcast %4 : vector<16x1xi32> to vector<16x64xi32>
    %146 = arith.cmpi slt, %144, %145 : vector<16x64xi32>
    %147 = arith.select %146, %136, %112 : vector<16x64xi1>, vector<16x64xf32>
    %148 = arith.select %146, %134, %113 : vector<16x64xi1>, vector<16x64xf32>
    %c4_i32_34 = arith.constant 4 : i32
    %c0_35 = arith.constant 0 : index
    %c0_36 = arith.constant 0 : index
    %149 = vector.load %arg8[%c0_35, %c0_36] : memref<16x64xf32, #tpu.memory_space<vmem>>, vector<16x64xf32>
    tpu.vector_store %arg8[%c0_35, %c0_36], %147 {strides = array<i32>} : memref<16x64xf32, #tpu.memory_space<vmem>>, vector<16x64xf32>,
    %c0_37 = arith.constant 0 : index
    %c0_38 = arith.constant 0 : index
    %150 = vector.load %arg9[%c0_37, %c0_38] : memref<16x64xf32, #tpu.memory_space<vmem>>, vector<16x64xf32>
    tpu.vector_store %arg9[%c0_37, %c0_38], %148 {strides = array<i32>} : memref<16x64xf32, #tpu.memory_space<vmem>>, vector<16x64xf32>,
    %c2_i32_39 = arith.constant 2 : i32
    %151 = arith.cmpi eq, %arg1, %c2_i32_39 : i32
    %152 = arith.extui %151 : i1 to i32
    %c0_i32_40 = arith.constant 0 : i32
    %153 = arith.cmpi ne, %152, %c0_i32_40 : i32
    scf.if %153 {
      %c0_41 = arith.constant 0 : index
      %c0_42 = arith.constant 0 : index
      %154 = vector.load %arg5[%c0_41, %c0_42] : memref<1x64xf32, #tpu.memory_space<vmem>>, vector<1x64xf32>
      %155 = vector.broadcast %154 : vector<1x64xf32> to vector<16x64xf32>
      %156 = arith.mulf %147, %155 : vector<16x64xf32>
      %cst_43 = arith.constant dense<0.000000e+00> : vector<16xf32>
      %157 = vector.multi_reduction <add>, %156, %cst_43 [1] : vector<16x64xf32> to vector<16xf32>
      %158 = vector.shape_cast %157 : vector<16xf32> to vector<16x1xf32>
      %c0_44 = arith.constant 0 : index
      %c0_45 = arith.constant 0 : index
      %159 = memref.load %arg6[%c0_44, %c0_45] : memref<1x1xf32, #tpu.memory_space<smem>>
      %160 = vector.broadcast %159 : f32 to vector<16x1xf32>
      %161 = arith.addf %158, %160 : vector<16x1xf32>
      %cst_46 = arith.constant 0.000000e+00 : f32
      %162 = vector.broadcast %cst_46 : f32 to vector<16x1xf32>
      %163 = arith.subf %162, %161 : vector<16x1xf32>
      %164 = math.exp %163 : vector<16x1xf32>
      %cst_47 = arith.constant 1.000000e+00 : f32
      %165 = vector.broadcast %cst_47 : f32 to vector<16x1xf32>
      %166 = arith.addf %165, %164 : vector<16x1xf32>
      %167 = tpu.reciprocal %166 : vector<16x1xf32> -> vector<16x1xf32>
      %c0_48 = arith.constant 0 : index
      %c0_49 = arith.constant 0 : index
      %168 = vector.load %arg7[%c0_48, %c0_49] : memref<16x1xf32, #tpu.memory_space<vmem>>, vector<16x1xf32>
      tpu.vector_store %arg7[%c0_48, %c0_49], %167 {strides = array<i32>} : memref<16x1xf32, #tpu.memory_space<vmem>>, vector<16x1xf32>,
    } else {
    }
    return
  }
  func.func @transform_0(%arg0: i32, %arg1: i32) -> (i32, i32, i32) {
    %c0_i32 = arith.constant 0 : i32
    %c0_i32_0 = arith.constant 0 : i32
    return %arg1, %arg0, %c0_i32 : i32, i32, i32
  }
  func.func @transform_1(%arg0: i32, %arg1: i32) -> (i32, i32) {
    %c0_i32 = arith.constant 0 : i32
    %c0_i32_0 = arith.constant 0 : i32
    return %arg0, %c0_i32 : i32, i32
  }
  func.func @transform_2(%arg0: i32, %arg1: i32) -> (i32, i32) {
    %c0_i32 = arith.constant 0 : i32
    %c0_i32_0 = arith.constant 0 : i32
    %c0_i32_1 = arith.constant 0 : i32
    return %c0_i32, %c0_i32_0 : i32, i32
  }
  func.func @transform_3(%arg0: i32, %arg1: i32) -> (i32, i32) {
    %c0_i32 = arith.constant 0 : i32
    %c0_i32_0 = arith.constant 0 : i32
    %c0_i32_1 = arith.constant 0 : i32
    return %c0_i32, %c0_i32_0 : i32, i32
  }
  func.func @transform_4(%arg0: i32, %arg1: i32) -> (i32, i32) {
    %c0_i32 = arith.constant 0 : i32
    %c0_i32_0 = arith.constant 0 : i32
    %c0_i32_1 = arith.constant 0 : i32
    return %c0_i32, %c0_i32_0 : i32, i32
  }
  func.func @transform_5(%arg0: i32, %arg1: i32) -> (i32, i32) {
    %c0_i32 = arith.constant 0 : i32
    %c0_i32_0 = arith.constant 0 : i32
    return %arg0, %c0_i32 : i32, i32
  }
}

</mosaic_0001>

<llo_original>
// kernel: _lambda_.1
$region0: #{_lambda_.1}
  #allocation0 [shape = 'u32[]', space=smem, size = 0x4, offset = 0x4, fixed_abs, tag = 'smem constant byte address 0x4 - core index']
  #allocation1 [shape = 'u32[72,128]{1,0:T(1,128)}', space=vmem, size = 0x9000, scoped, tag = 'internal scratch']
  #allocation2 [shape = 'f32[16,64]{1,0:T(8,128)}', space=vmem, size = 0x2000, scoped, tag = 'scratch operand']
  #allocation3 [shape = 'f32[16,64]{1,0:T(8,128)}', space=vmem, size = 0x2000, scoped, tag = 'scratch operand']
  #allocation4 [shape = 'f32[1,1]{1,0:T(1,128)S(6)}', space=smem, size = 0x200, scoped, tag = 'scoped memory for _lambda_.1']
  %s0 = inlined_call_operand.vmem [shape: bf16[12,16,256], index: 0, kind: input, shape index: {}]
  %s1 = inlined_call_operand.vmem [shape: s32[16,1], index: 1, kind: input, shape index: {}]
  %s2 = inlined_call_operand.vmem [shape: f32[64,256], index: 2, kind: input, shape index: {}]
  %s3 = inlined_call_operand.vmem [shape: f32[1,64], index: 3, kind: input, shape index: {}]
  %s4 = inlined_call_operand.<no memory space> [shape: f32[1,1], index: 4, kind: input, shape index: {}]
  %s5 = inlined_call_operand.vmem [shape: f32[16,1], index: 5, kind: output, shape index: {}]
  %s6 = sld [smem:[#allocation0]]
  $region61: #{_lambda_.1} parent=0
    _
  %s8 = ssub.s32 1, %s6
  %s9 = scalar_select 0, %s8, %s6
  %10 = sst [smem:[#allocation4]] %s4
  loop: start=0, step=1, limit=5
  $region2: #{_lambda_.1} parent=0 // loop_pre_header
    _
  $region3: #{_lambda_.1} parent=0 // loop_header
    %s12 = sphi 0, %s16
    %p13 = scmp.ge.s32.totalorder %s12, 5
    %s19 = sphi 0, %s31
    %s20 = sphi 0, %s27
    %s21 = sphi 0, %s19
    %s22 = sphi 0, %s20
    %s23 = sphi 0, %s21
    %s24 = sphi 0, %s22
    %s36 = sphi 0, %s38
    %s39 = sphi 0, %s36
    %s40 = sphi 0, %s39
    %s56 = sphi 0, %s40
    %s62 = sphi 0, %s64
    %s65 = sphi 0, %s62
    %s66 = sphi 0, %s65
    %s82 = sphi 0, %s66
    %s86 = sphi 0, %s86
    %s88 = sphi 0, %s86
    %s89 = sphi 0, %s88
    %s103 = sphi 0, %s89
    %s107 = sphi 0, %s107
    %s109 = sphi 0, %s107
    %s110 = sphi 0, %s109
    %s124 = sphi 0, %s110
    %s128 = sphi 0, %s128
    %s130 = sphi 0, %s128
    %s131 = sphi 0, %s130
    %s145 = sphi 0, %s131
    %s151 = sphi 0, %s153
    %s154 = sphi 0, %s151
    %s155 = sphi 0, %s154
    %s171 = sphi 0, %s155
  $region4: #{_lambda_.1} parent=0 // loop_header_branch
    %15 = sbr.rel (%p13) target = $region8
  $region5: #{_lambda_.1} parent=0 // loop_body
    %s17 = ssub.s32 %s12, 1
    %s18 = ssub.s32 %s12, 2
    %s25 = sadd.s32 1, %s20
    %p26 = scmp.ge.s32.totalorder %s25, 3
    %s27 = scalar_select %p26, 0, %s25
    %s28 = sadd.s32 1, %s19
    %s29 = scalar_select %p26, %s28, %s19
    %p30 = scmp.ge.s32.totalorder %s29, 1
    %s31 = scalar_select %p30, 0, %s29
    %s32 = ssub.s32 %s20, %s27
    %s33 = ssub.s32 %s19, %s31
    %s34 = sor.u32 %s32, %s33
    %p35 = scmp.eq.s32.totalorder %s34, 0
    %s37 = sadd.s32 %s36, 1
    %s38 = scalar_select %p35, %s36, %s37
    %p41 = pneg %p35
    %p42 = scmp.eq.s32.totalorder %s12, 2
    %p43 = por %p41, %p42
    %p44 = scmp.ne.s32.totalorder %s36, %s39
    %p45 = scmp.eq.s32.totalorder %s12, 0
    %p46 = por %p44, %p45
    %p47 = scmp.ne.s32.totalorder %s36, %s39
    %p48 = scmp.eq.s32.totalorder %s17, 2
    %p49 = por %p47, %p48
    %p50 = scmp.ne.s32.totalorder %s39, %s40
    %p51 = scmp.eq.s32.totalorder %s17, 0
    %p52 = por %p50, %p51
    %p53 = scmp.ne.s32.totalorder %s39, %s40
    %p54 = scmp.eq.s32.totalorder %s18, 2
    %p55 = por %p53, %p54
    %p57 = scmp.ne.s32.totalorder %s40, %s56
    %p58 = scmp.eq.s32.totalorder %s18, 0
    %p59 = por %p57, %p58
    %s60 = ssub.s32 %s19, %s31
    %p61 = scmp.eq.s32.totalorder %s60, 0
    %s63 = sadd.s32 %s62, 1
    %s64 = scalar_select %p61, %s62, %s63
    %p67 = pneg %p61
    %p68 = scmp.eq.s32.totalorder %s12, 2
    %p69 = por %p67, %p68
    %p70 = scmp.ne.s32.totalorder %s62, %s65
    %p71 = scmp.eq.s32.totalorder %s12, 0
    %p72 = por %p70, %p71
    %p73 = scmp.ne.s32.totalorder %s62, %s65
    %p74 = scmp.eq.s32.totalorder %s17, 2
    %p75 = por %p73, %p74
    %p76 = scmp.ne.s32.totalorder %s65, %s66
    %p77 = scmp.eq.s32.totalorder %s17, 0
    %p78 = por %p76, %p77
    %p79 = scmp.ne.s32.totalorder %s65, %s66
    %p80 = scmp.eq.s32.totalorder %s18, 2
    %p81 = por %p79, %p80
    %p83 = scmp.ne.s32.totalorder %s66, %s82
    %p84 = scmp.eq.s32.totalorder %s18, 0
    %p85 = por %p83, %p84
    %s87 = sadd.s32 %s86, 1
    %p90 = scmp.eq.s32.totalorder %s12, 2
    %p91 = scmp.ne.s32.totalorder %s86, %s88
    %p92 = scmp.eq.s32.totalorder %s12, 0
    %p93 = por %p91, %p92
    %p94 = scmp.ne.s32.totalorder %s86, %s88
    %p95 = scmp.eq.s32.totalorder %s17, 2
    %p96 = por %p94, %p95
    %p97 = scmp.ne.s32.totalorder %s88, %s89
    %p98 = scmp.eq.s32.totalorder %s17, 0
    %p99 = por %p97, %p98
    %p100 = scmp.ne.s32.totalorder %s88, %s89
    %p101 = scmp.eq.s32.totalorder %s18, 2
    %p102 = por %p100, %p101
    %p104 = scmp.ne.s32.totalorder %s89, %s103
    %p105 = scmp.eq.s32.totalorder %s18, 0
    %p106 = por %p104, %p105
    %s108 = sadd.s32 %s107, 1
    %p111 = scmp.eq.s32.totalorder %s12, 2
    %p112 = scmp.ne.s32.totalorder %s107, %s109
    %p113 = scmp.eq.s32.totalorder %s12, 0
    %p114 = por %p112, %p113
    %p115 = scmp.ne.s32.totalorder %s107, %s109
    %p116 = scmp.eq.s32.totalorder %s17, 2
    %p117 = por %p115, %p116
    %p118 = scmp.ne.s32.totalorder %s109, %s110
    %p119 = scmp.eq.s32.totalorder %s17, 0
    %p120 = por %p118, %p119
    %p121 = scmp.ne.s32.totalorder %s109, %s110
    %p122 = scmp.eq.s32.totalorder %s18, 2
    %p123 = por %p121, %p122
    %p125 = scmp.ne.s32.totalorder %s110, %s124
    %p126 = scmp.eq.s32.totalorder %s18, 0
    %p127 = por %p125, %p126
    %s129 = sadd.s32 %s128, 1
    %p132 = scmp.eq.s32.totalorder %s12, 2
    %p133 = scmp.ne.s32.totalorder %s128, %s130
    %p134 = scmp.eq.s32.totalorder %s12, 0
    %p135 = por %p133, %p134
    %p136 = scmp.ne.s32.totalorder %s128, %s130
    %p137 = scmp.eq.s32.totalorder %s17, 2
    %p138 = por %p136, %p137
    %p139 = scmp.ne.s32.totalorder %s130, %s131
    %p140 = scmp.eq.s32.totalorder %s17, 0
    %p141 = por %p139, %p140
    %p142 = scmp.ne.s32.totalorder %s130, %s131
    %p143 = scmp.eq.s32.totalorder %s18, 2
    %p144 = por %p142, %p143
    %p146 = scmp.ne.s32.totalorder %s131, %s145
    %p147 = scmp.eq.s32.totalorder %s18, 0
    %p148 = por %p146, %p147
    %s149 = ssub.s32 %s19, %s31
    %p150 = scmp.eq.s32.totalorder %s149, 0
    %s152 = sadd.s32 %s151, 1
    %s153 = scalar_select %p150, %s151, %s152
    %p156 = pneg %p150
    %p157 = scmp.eq.s32.totalorder %s12, 2
    %p158 = por %p156, %p157
    %p159 = scmp.ne.s32.totalorder %s151, %s154
    %p160 = scmp.eq.s32.totalorder %s12, 0
    %p161 = por %p159, %p160
    %p162 = scmp.ne.s32.totalorder %s151, %s154
    %p163 = scmp.eq.s32.totalorder %s17, 2
    %p164 = por %p162, %p163
    %p165 = scmp.ne.s32.totalorder %s154, %s155
    %p166 = scmp.eq.s32.totalorder %s17, 0
    %p167 = por %p165, %p166
    %p168 = scmp.ne.s32.totalorder %s154, %s155
    %p169 = scmp.eq.s32.totalorder %s18, 2
    %p170 = por %p168, %p169
    %p172 = scmp.ne.s32.totalorder %s155, %s171
    %p173 = scmp.eq.s32.totalorder %s18, 0
    %p174 = por %p172, %p173
    %p175 = scmp.le.s32.totalorder 1, %s12
    %p176 = scmp.lt.s32.totalorder %s12, 4
    %p177 = pnand %p175, %p176
    %p178 = pneg %p177
    // Predicated region
    $region9: #{_lambda_.1} parent=5 // pred_check
      _
    $region10: #{_lambda_.1} parent=5 // pred_check_branch
      %180 = sbr.rel (%p177) target = $region12
    $region11: #{_lambda_.1} parent=5 // pred_region
      %s181 = ssub.s32 %s12, 1
      // Predicated region
      $region13: #{_lambda_.1} parent=11 // pred_check
        %p182 = pneg %p78
      $region14: #{_lambda_.1} parent=11 // pred_check_branch
        %184 = sbr.rel (%p182) target = $region16
      $region15: #{_lambda_.1} parent=11 // pred_region
        %s185 = smul.u32 2, %s21
        %p186 = scmp.lt.s32.totalorder %s185, 1
        %s187 = scalar_select %p186, %s185, 1
        %s188 = smul.addr %s187, 8
        %s189 = scalar_lea.vmem %s1, %s188
        %s190 = smul.u32 2, %s21
      $region16: #{_lambda_.1} parent=11 // pred_fallthru
        _
      // Predicated region
      $region17: #{_lambda_.1} parent=11 // pred_check
        %p191 = pneg %p99
      $region18: #{_lambda_.1} parent=11 // pred_check_branch
        %193 = sbr.rel (%p191) target = $region20
      $region19: #{_lambda_.1} parent=11 // pred_region
        _
      $region20: #{_lambda_.1} parent=11 // pred_fallthru
        _
      // Predicated region
      $region21: #{_lambda_.1} parent=11 // pred_check
        %p194 = pneg %p120
      $region22: #{_lambda_.1} parent=11 // pred_check_branch
        %196 = sbr.rel (%p194) target = $region24
      $region23: #{_lambda_.1} parent=11 // pred_region
        _
      $region24: #{_lambda_.1} parent=11 // pred_fallthru
        _
      // Predicated region
      $region25: #{_lambda_.1} parent=11 // pred_check
        %p197 = pneg %p141
      $region26: #{_lambda_.1} parent=11 // pred_check_branch
        %199 = sbr.rel (%p197) target = $region28
      $region27: #{_lambda_.1} parent=11 // pred_region
        _
      $region28: #{_lambda_.1} parent=11 // pred_fallthru
        _
    $region12: #{_lambda_.1} parent=5 // pred_fallthru
      _
    %p200 = scmp.lt.s32.totalorder %s12, 3
    // Predicated region
    $region29: #{_lambda_.1} parent=5 // pred_check
      %p201 = pneg %p200
    $region30: #{_lambda_.1} parent=5 // pred_check_branch
      %203 = sbr.rel (%p201) target = $region32
    $region31: #{_lambda_.1} parent=5 // pred_region
      // Predicated region
      $region33: #{_lambda_.1} parent=31 // pred_check
        %p204 = pneg %p46
      $region34: #{_lambda_.1} parent=31 // pred_check_branch
        %206 = sbr.rel (%p204) target = $region36
      $region35: #{_lambda_.1} parent=31 // pred_region
        %s207 = smul.u32 4, %s20
        %s208 = smul.u32 2, %s19
        %p209 = scmp.lt.s32.totalorder %s207, 11
        %s210 = scalar_select %p209, %s207, 11
        %p211 = scmp.lt.s32.totalorder %s208, 1
        %s212 = scalar_select %p211, %s208, 1
        %s213 = smul.addr %s212, 2
        %s214 = smul.addr %s210, 4
        %s215 = sadd.s32 %s213, %s214
        %s216 = smul.addr %s215, 4
        %s217 = scalar_lea.vmem %s0, %s216
        %s218 = smul.u32 4, %s20
        %s219 = smul.u32 2, %s19
      $region36: #{_lambda_.1} parent=31 // pred_fallthru
        _
    $region32: #{_lambda_.1} parent=5 // pred_fallthru
      _
    %p220 = scmp.le.s32.totalorder 1, %s12
    %p221 = scmp.lt.s32.totalorder %s12, 4
    %p222 = pnand %p220, %p221
    %p223 = pneg %p222
    // Predicated region
    $region37: #{_lambda_.1} parent=5 // pred_check
      _
    $region38: #{_lambda_.1} parent=5 // pred_check_branch
      %225 = sbr.rel (%p222) target = $region40
    $region39: #{_lambda_.1} parent=5 // pred_region
      %s226 = ssub.s32 %s12, 1
      %s227 = smul.u32 4, %s22
      %s228 = smul.u32 2, %s21
      %p229 = scmp.lt.s32.totalorder %s227, 11
      %s230 = scalar_select %p229, %s227, 11
      %p231 = scmp.lt.s32.totalorder %s228, 1
      %s232 = scalar_select %p231, %s228, 1
      %s233 = smul.addr %s232, 2
      %s234 = smul.addr %s230, 4
      %s235 = sadd.s32 %s233, %s234
      %s236 = smul.addr %s235, 4
      %s237 = scalar_lea.vmem %s0, %s236
      %p238 = pneg %p52
      %p239 = pneg %p49
      %s240 = smul.u32 2, %s21
      %p241 = scmp.lt.s32.totalorder %s240, 1
      %s242 = scalar_select %p241, %s240, 1
      %s243 = smul.addr %s242, 8
      %s244 = scalar_lea.vmem %s1, %s243
      %p245 = pneg %p78
      %p246 = pneg %p75
      %p247 = pneg %p99
      %p248 = pneg %p96
      %p249 = pneg %p120
      %p250 = pneg %p117
      %p251 = pneg %p141
      %p252 = pneg %p138
      %p253 = pneg %p167
      %p254 = pneg %p164
      %s255 = smul.u32 2, %s21
      %p256 = scmp.lt.s32.totalorder %s255, 1
      %s257 = scalar_select %p256, %s255, 1
      %s258 = smul.addr %s257, 8
      %s259 = scalar_lea.vmem %s5, %s258
      %s260 = smul.u32 4, %s22
      %s261 = smul.u32 2, %s21
      %p262 = scmp.lt.s32.totalorder %s260, 11
      %s263 = scalar_select %p262, %s260, 11
      %p264 = scmp.lt.s32.totalorder %s261, 1
      %s265 = scalar_select %p264, %s261, 1
      %s266 = smul.addr %s265, 2
      %s267 = smul.addr %s263, 4
      %s268 = sadd.s32 %s266, %s267
      %s269 = smul.addr %s268, 4
      %s270 = scalar_lea.vmem %s0, %s269
      %s271 = smul.u32 4, %s22
      %s272 = smul.u32 2, %s21
      %s273 = smul.u32 2, %s21
      %p274 = scmp.lt.s32.totalorder %s273, 1
      %s275 = scalar_select %p274, %s273, 1
      %s276 = smul.addr %s275, 8
      %s277 = scalar_lea.vmem %s1, %s276
      %s278 = smul.u32 2, %s21
      %s279 = smul.u32 2, %s21
      %p280 = scmp.lt.s32.totalorder %s279, 1
      %s281 = scalar_select %p280, %s279, 1
      %s282 = smul.addr %s281, 8
      %s283 = scalar_lea.vmem %s5, %s282
      %s284 = smul.u32 2, %s21
      %p285 = scmp.eq.s32.totalorder %s22, 0
      // Predicated region
      $region41: #{_lambda_.1} parent=39 // pred_check
        %p286 = pneg %p285
      $region42: #{_lambda_.1} parent=39 // pred_check_branch
        %288 = sbr.rel (%p286) target = $region44
      $region43: #{_lambda_.1} parent=39 // pred_region
        %vm289 = vcmask 523264
        %290 = vst.msk [vmem:[#allocation2] sm:$0xff] %vm289, 0.0
        %291 = vst.msk [vmem:[#allocation2 + $0x8] sm:$0xff] %vm289, 0.0
        %292 = vst.msk [vmem:[#allocation3] sm:$0xff] %vm289, 0.0
        %293 = vst.msk [vmem:[#allocation3 + $0x8] sm:$0xff] %vm289, 0.0
      $region44: #{_lambda_.1} parent=39 // pred_fallthru
        _
      %v294 = vld [vmem:[%s2] sm:$0xff]
      %v295 = vld [vmem:[%s2 + $0x8] sm:$0xff]
      %v296 = vld [vmem:[%s2 + $0x10] sm:$0xff]
      %v297 = vld [vmem:[%s2 + $0x18] sm:$0xff]
      %v298 = vld [vmem:[%s2 + $0x20] sm:$0xff]
      %v299 = vld [vmem:[%s2 + $0x28] sm:$0xff]
      %v300 = vld [vmem:[%s2 + $0x30] sm:$0xff]
      %v301 = vld [vmem:[%s2 + $0x38] sm:$0xff]
      %v302 = vld [vmem:[%s2 + $0x40] sm:$0xff]
      %v303 = vld [vmem:[%s2 + $0x48] sm:$0xff]
      %v304 = vld [vmem:[%s2 + $0x50] sm:$0xff]
      %v305 = vld [vmem:[%s2 + $0x58] sm:$0xff]
      %v306 = vld [vmem:[%s2 + $0x60] sm:$0xff]
      %v307 = vld [vmem:[%s2 + $0x68] sm:$0xff]
      %v308 = vld [vmem:[%s2 + $0x70] sm:$0xff]
      %v309 = vld [vmem:[%s2 + $0x78] sm:$0xff]
      %v310 = vld [vmem:[%s277] sm:$0xff]
      %v311 = vld [vmem:[%s277 + $0x8] sm:$0xff]
      %v312 = vlaneseq
      %v313 = vand.u32 %v312, 127
      %s314 = smul.u32 %s22, 4
      %v315 = vld [vmem:[#allocation2] sm:$0xff]
      %v316 = vld [vmem:[#allocation2 + $0x8] sm:$0xff]
      %v317 = vld [vmem:[#allocation3] sm:$0xff]
      %v318 = vld [vmem:[#allocation3 + $0x8] sm:$0xff]
      %v319 = vld [vmem:[%s270] sm:$0xff]
      %v320 = vld [vmem:[%s270 + $0x8] sm:$0xff]
      %v321 = vunpack.c.l.bf16 %v319
      %v322 = vunpack.c.h.bf16 %v319
      %v323 = vunpack.c.l.bf16 %v320
      %v324 = vunpack.c.h.bf16 %v320
      %vm325 = vcmask 523264
      %v327 = vsel %vm325, %v315, 0
      %v330 = vsel %vm325, %v316, 0
      %332 = vmatpush.msra.mxu0 0.0
      %333 = vmatpush.msra.mxu0 0.0
      %334 = vmatpush.msra.mxu0 0.0
      %335 = vmatpush.msra.mxu0 0.0
      %336 = vmatpush.msra.mxu0 0.0
      %337 = vmatpush.msra.mxu0 0.0
      %338 = vmatpush.msra.mxu0 0.0
      %339 = vmatpush.msra.mxu0 0.0
      %340 = vmatpush.msra.mxu0 %v308
      %341 = vmatpush.msra.mxu0 %v306
      %342 = vmatpush.msra.mxu0 %v304
      %343 = vmatpush.msra.mxu0 %v302
      %344 = vmatpush.msra.mxu0 %v300
      %345 = vmatpush.msra.mxu0 %v298
      %346 = vmatpush.msra.mxu0 %v296
      %347 = vmatpush.msra.mxu0 %v294
      %348 = vmatmul.f32.gmra.mxu0 %v327
      %v349 = vpop.f32.mrf.mxu0
      %v350 = vadd.f32 0.0, %v349
      %351 = vmatmul.f32.gmra.mxu0 %v330
      %v352 = vpop.f32.mrf.mxu0
      %v353 = vadd.f32 0.0, %v352
      %354 = vdwg.mxu0
      %355 = vmatpush.msra.mxu0 0.0
      %356 = vmatpush.msra.mxu0 0.0
      %357 = vmatpush.msra.mxu0 0.0
      %358 = vmatpush.msra.mxu0 0.0
      %359 = vmatpush.msra.mxu0 0.0
      %360 = vmatpush.msra.mxu0 0.0
      %361 = vmatpush.msra.mxu0 0.0
      %362 = vmatpush.msra.mxu0 0.0
      %363 = vmatpush.msra.mxu0 %v309
      %364 = vmatpush.msra.mxu0 %v307
      %365 = vmatpush.msra.mxu0 %v305
      %366 = vmatpush.msra.mxu0 %v303
      %367 = vmatpush.msra.mxu0 %v301
      %368 = vmatpush.msra.mxu0 %v299
      %369 = vmatpush.msra.mxu0 %v297
      %370 = vmatpush.msra.mxu0 %v295
      %371 = vmatmul.f32.gmra.mxu0 %v327
      %v372 = vpop.f32.mrf.mxu0
      %v373 = vadd.f32 0.0, %v372
      %374 = vmatmul.f32.gmra.mxu0 %v330
      %v375 = vpop.f32.mrf.mxu0
      %v376 = vadd.f32 0.0, %v375
      %377 = vdwg.mxu0
      %v378 = vadd.f32 %v321, %v350
      %v379 = vadd.f32 %v322, %v373
      %v380 = vadd.f32 %v323, %v353
      %v381 = vadd.f32 %v324, %v376
      %v382 = vsub.f32 0.0, %v378
      %v383 = vsub.f32 0.0, %v379
      %v384 = vsub.f32 0.0, %v380
      %v385 = vsub.f32 0.0, %v381
      %v386 = vmul.f32 %v382, 1.442695
      %v387 = vpow.pop %v386
      %v388 = vmul.f32 %v383, 1.442695
      %v389 = vpow.pop %v388
      %v390 = vmul.f32 %v384, 1.442695
      %v391 = vpow.pop %v390
      %v392 = vmul.f32 %v385, 1.442695
      %v393 = vpow.pop %v392
      %v394 = vadd.f32 %v387, 1.0
      %v395 = vadd.f32 %v389, 1.0
      %v396 = vadd.f32 %v391, 1.0
      %v397 = vadd.f32 %v393, 1.0
      %v398 = vrcp.pop %v394
      %v399 = vmul.f32 %v394, %v398
      %v400 = vsub.f32 1.0, %v399
      %v401 = vmul.f32 %v398, %v400
      %v402 = vadd.f32 %v398, %v401
      %vm403 = vweird.f32 %v394
      %vm404 = vweird.f32 %v398
      %vm405 = vmor %vm403, %vm404
      %v406 = vsel %vm405, %v398, %v402
      %v407 = vand.u32 2147483647, %v394
      %vm408 = vcmp.eq.f32.partialorder %v407, 8.507059e+37
      %v409 = vand.u32 %v394, 2147483648
      %v410 = vor.u32 1.1754944e-38, %v409
      %v411 = vsel %vm408, %v410, %v406
      %v412 = vrcp.pop %v395
      %v413 = vmul.f32 %v395, %v412
      %v414 = vsub.f32 1.0, %v413
      %v415 = vmul.f32 %v412, %v414
      %v416 = vadd.f32 %v412, %v415
      %vm417 = vweird.f32 %v395
      %vm418 = vweird.f32 %v412
      %vm419 = vmor %vm417, %vm418
      %v420 = vsel %vm419, %v412, %v416
      %v421 = vand.u32 2147483647, %v395
      %vm422 = vcmp.eq.f32.partialorder %v421, 8.507059e+37
      %v423 = vand.u32 %v395, 2147483648
      %v424 = vor.u32 1.1754944e-38, %v423
      %v425 = vsel %vm422, %v424, %v420
      %v426 = vrcp.pop %v396
      %v427 = vmul.f32 %v396, %v426
      %v428 = vsub.f32 1.0, %v427
      %v429 = vmul.f32 %v426, %v428
      %v430 = vadd.f32 %v426, %v429
      %vm431 = vweird.f32 %v396
      %vm432 = vweird.f32 %v426
      %vm433 = vmor %vm431, %vm432
      %v434 = vsel %vm433, %v426, %v430
      %v435 = vand.u32 2147483647, %v396
      %vm436 = vcmp.eq.f32.partialorder %v435, 8.507059e+37
      %v437 = vand.u32 %v396, 2147483648
      %v438 = vor.u32 1.1754944e-38, %v437
      %v439 = vsel %vm436, %v438, %v434
      %v440 = vrcp.pop %v397
      %v441 = vmul.f32 %v397, %v440
      %v442 = vsub.f32 1.0, %v441
      %v443 = vmul.f32 %v440, %v442
      %v444 = vadd.f32 %v440, %v443
      %vm445 = vweird.f32 %v397
      %vm446 = vweird.f32 %v440
      %vm447 = vmor %vm445, %vm446
      %v448 = vsel %vm447, %v440, %v444
      %v449 = vand.u32 2147483647, %v397
      %vm450 = vcmp.eq.f32.partialorder %v449, 8.507059e+37
      %v451 = vand.u32 %v397, 2147483648
      %v452 = vor.u32 1.1754944e-38, %v451
      %v453 = vsel %vm450, %v452, %v448
      %v454 = vtanh.pop %v379
      %v455 = vtanh.pop %v381
      %458 = vrot.lane.b32.xlu0 %v317, 64
      %v459 = vpop.permute.xlu0 %458
      %460 = vrot.lane.b32.xlu0 %v318, 64
      %v461 = vpop.permute.xlu0 %460
      %v464 = vmul.f32 %v411, %v459
      %v465 = vmul.f32 %v439, %v461
      %468 = vrot.lane.b32.xlu0 %v454, 64
      %v469 = vpop.permute.xlu0 %468
      %470 = vrot.lane.b32.xlu0 %v455, 64
      %v471 = vpop.permute.xlu0 %470
      %v474 = vmul.f32 %v411, %v469
      %v475 = vmul.f32 %v439, %v471
      %478 = vrot.lane.b32.xlu0 %v474, 64
      %v479 = vpop.permute.xlu0 %478
      %480 = vrot.lane.b32.xlu0 %v475, 64
      %v481 = vpop.permute.xlu0 %480
      %v484 = vadd.f32 %v464, %v479
      %v485 = vadd.f32 %v465, %v481
      %v486 = vtanh.pop %v484
      %v487 = vtanh.pop %v485
      %490 = vrot.lane.b32.xlu0 %v486, 64
      %v491 = vpop.permute.xlu0 %490
      %492 = vrot.lane.b32.xlu0 %v487, 64
      %v493 = vpop.permute.xlu0 %492
      %v496 = vmul.f32 %v425, %v491
      %v497 = vmul.f32 %v453, %v493
      %vm498 = vcmp.lt.s32.totalorder %v313, 32
      %s499 = ssub.s32 11, %s314
      %v500 = vstv %s314
      %v501 = vstv %s499
      %v502 = vsel %vm498, %v500, %v501
      %503 = vset.pattern.permute.xlu0 0
      %504 = vperm.xlu0 %503, %v310
      %v505 = vpop.permute.xlu0 %504
      %506 = vset.pattern.permute.xlu0 0
      %507 = vperm.xlu0 %506, %v311
      %v508 = vpop.permute.xlu0 %507
      %vm509 = vcmp.lt.s32.totalorder %v502, %v505
      %vm510 = vcmp.lt.s32.totalorder %v502, %v508
      %v511 = vsel %vm509, %v496, %v315
      %v512 = vsel %vm510, %v497, %v316
      %515 = vrot.lane.b32.xlu0 %v484, 64
      %v516 = vpop.permute.xlu0 %515
      %517 = vrot.lane.b32.xlu0 %v485, 64
      %v518 = vpop.permute.xlu0 %517
      %v521 = vsel %vm509, %v516, %v317
      %v522 = vsel %vm510, %v518, %v318
      %s523 = scalar_lea.vmem %s270, 16
      %v524 = vld [vmem:[%s523] sm:$0xff]
      %v525 = vld [vmem:[%s523 + $0x8] sm:$0xff]
      %v526 = vunpack.c.l.bf16 %v524
      %v527 = vunpack.c.h.bf16 %v524
      %v528 = vunpack.c.l.bf16 %v525
      %v529 = vunpack.c.h.bf16 %v525
      %v531 = vsel %vm325, %v511, 0
      %v534 = vsel %vm325, %v512, 0
      %536 = vmatpush.msra.mxu0 0.0
      %537 = vmatpush.msra.mxu0 0.0
      %538 = vmatpush.msra.mxu0 0.0
      %539 = vmatpush.msra.mxu0 0.0
      %540 = vmatpush.msra.mxu0 0.0
      %541 = vmatpush.msra.mxu0 0.0
      %542 = vmatpush.msra.mxu0 0.0
      %543 = vmatpush.msra.mxu0 0.0
      %544 = vmatpush.msra.mxu0 %v308
      %545 = vmatpush.msra.mxu0 %v306
      %546 = vmatpush.msra.mxu0 %v304
      %547 = vmatpush.msra.mxu0 %v302
      %548 = vmatpush.msra.mxu0 %v300
      %549 = vmatpush.msra.mxu0 %v298
      %550 = vmatpush.msra.mxu0 %v296
      %551 = vmatpush.msra.mxu0 %v294
      %552 = vmatmul.f32.gmra.mxu0 %v531
      %v553 = vpop.f32.mrf.mxu0
      %v554 = vadd.f32 0.0, %v553
      %555 = vmatmul.f32.gmra.mxu0 %v534
      %v556 = vpop.f32.mrf.mxu0
      %v557 = vadd.f32 0.0, %v556
      %558 = vdwg.mxu0
      %559 = vmatpush.msra.mxu0 0.0
      %560 = vmatpush.msra.mxu0 0.0
      %561 = vmatpush.msra.mxu0 0.0
      %562 = vmatpush.msra.mxu0 0.0
      %563 = vmatpush.msra.mxu0 0.0
      %564 = vmatpush.msra.mxu0 0.0
      %565 = vmatpush.msra.mxu0 0.0
      %566 = vmatpush.msra.mxu0 0.0
      %567 = vmatpush.msra.mxu0 %v309
      %568 = vmatpush.msra.mxu0 %v307
      %569 = vmatpush.msra.mxu0 %v305
      %570 = vmatpush.msra.mxu0 %v303
      %571 = vmatpush.msra.mxu0 %v301
      %572 = vmatpush.msra.mxu0 %v299
      %573 = vmatpush.msra.mxu0 %v297
      %574 = vmatpush.msra.mxu0 %v295
      %575 = vmatmul.f32.gmra.mxu0 %v531
      %v576 = vpop.f32.mrf.mxu0
      %v577 = vadd.f32 0.0, %v576
      %578 = vmatmul.f32.gmra.mxu0 %v534
      %v579 = vpop.f32.mrf.mxu0
      %v580 = vadd.f32 0.0, %v579
      %581 = vdwg.mxu0
      %v582 = vadd.f32 %v526, %v554
      %v583 = vadd.f32 %v527, %v577
      %v584 = vadd.f32 %v528, %v557
      %v585 = vadd.f32 %v529, %v580
      %v586 = vsub.f32 0.0, %v582
      %v587 = vsub.f32 0.0, %v583
      %v588 = vsub.f32 0.0, %v584
      %v589 = vsub.f32 0.0, %v585
      %v590 = vmul.f32 %v586, 1.442695
      %v591 = vpow.pop %v590
      %v592 = vmul.f32 %v587, 1.442695
      %v593 = vpow.pop %v592
      %v594 = vmul.f32 %v588, 1.442695
      %v595 = vpow.pop %v594
      %v596 = vmul.f32 %v589, 1.442695
      %v597 = vpow.pop %v596
      %v598 = vadd.f32 %v591, 1.0
      %v599 = vadd.f32 %v593, 1.0
      %v600 = vadd.f32 %v595, 1.0
      %v601 = vadd.f32 %v597, 1.0
      %v602 = vrcp.pop %v598
      %v603 = vmul.f32 %v598, %v602
      %v604 = vsub.f32 1.0, %v603
      %v605 = vmul.f32 %v602, %v604
      %v606 = vadd.f32 %v602, %v605
      %vm607 = vweird.f32 %v598
      %vm608 = vweird.f32 %v602
      %vm609 = vmor %vm607, %vm608
      %v610 = vsel %vm609, %v602, %v606
      %v611 = vand.u32 2147483647, %v598
      %vm612 = vcmp.eq.f32.partialorder %v611, 8.507059e+37
      %v613 = vand.u32 %v598, 2147483648
      %v614 = vor.u32 1.1754944e-38, %v613
      %v615 = vsel %vm612, %v614, %v610
      %v616 = vrcp.pop %v599
      %v617 = vmul.f32 %v599, %v616
      %v618 = vsub.f32 1.0, %v617
      %v619 = vmul.f32 %v616, %v618
      %v620 = vadd.f32 %v616, %v619
      %vm621 = vweird.f32 %v599
      %vm622 = vweird.f32 %v616
      %vm623 = vmor %vm621, %vm622
      %v624 = vsel %vm623, %v616, %v620
      %v625 = vand.u32 2147483647, %v599
      %vm626 = vcmp.eq.f32.partialorder %v625, 8.507059e+37
      %v627 = vand.u32 %v599, 2147483648
      %v628 = vor.u32 1.1754944e-38, %v627
      %v629 = vsel %vm626, %v628, %v624
      %v630 = vrcp.pop %v600
      %v631 = vmul.f32 %v600, %v630
      %v632 = vsub.f32 1.0, %v631
      %v633 = vmul.f32 %v630, %v632
      %v634 = vadd.f32 %v630, %v633
      %vm635 = vweird.f32 %v600
      %vm636 = vweird.f32 %v630
      %vm637 = vmor %vm635, %vm636
      %v638 = vsel %vm637, %v630, %v634
      %v639 = vand.u32 2147483647, %v600
      %vm640 = vcmp.eq.f32.partialorder %v639, 8.507059e+37
      %v641 = vand.u32 %v600, 2147483648
      %v642 = vor.u32 1.1754944e-38, %v641
      %v643 = vsel %vm640, %v642, %v638
      %v644 = vrcp.pop %v601
      %v645 = vmul.f32 %v601, %v644
      %v646 = vsub.f32 1.0, %v645
      %v647 = vmul.f32 %v644, %v646
      %v648 = vadd.f32 %v644, %v647
      %vm649 = vweird.f32 %v601
      %vm650 = vweird.f32 %v644
      %vm651 = vmor %vm649, %vm650
      %v652 = vsel %vm651, %v644, %v648
      %v653 = vand.u32 2147483647, %v601
      %vm654 = vcmp.eq.f32.partialorder %v653, 8.507059e+37
      %v655 = vand.u32 %v601, 2147483648
      %v656 = vor.u32 1.1754944e-38, %v655
      %v657 = vsel %vm654, %v656, %v652
      %v658 = vtanh.pop %v583
      %v659 = vtanh.pop %v585
      %662 = vrot.lane.b32.xlu0 %v521, 64
      %v663 = vpop.permute.xlu0 %662
      %664 = vrot.lane.b32.xlu0 %v522, 64
      %v665 = vpop.permute.xlu0 %664
      %v668 = vmul.f32 %v615, %v663
      %v669 = vmul.f32 %v643, %v665
      %672 = vrot.lane.b32.xlu0 %v658, 64
      %v673 = vpop.permute.xlu0 %672
      %674 = vrot.lane.b32.xlu0 %v659, 64
      %v675 = vpop.permute.xlu0 %674
      %v678 = vmul.f32 %v615, %v673
      %v679 = vmul.f32 %v643, %v675
      %682 = vrot.lane.b32.xlu0 %v678, 64
      %v683 = vpop.permute.xlu0 %682
      %684 = vrot.lane.b32.xlu0 %v679, 64
      %v685 = vpop.permute.xlu0 %684
      %v688 = vadd.f32 %v668, %v683
      %v689 = vadd.f32 %v669, %v685
      %v690 = vtanh.pop %v688
      %v691 = vtanh.pop %v689
      %694 = vrot.lane.b32.xlu0 %v690, 64
      %v695 = vpop.permute.xlu0 %694
      %696 = vrot.lane.b32.xlu0 %v691, 64
      %v697 = vpop.permute.xlu0 %696
      %v700 = vmul.f32 %v629, %v695
      %v701 = vmul.f32 %v657, %v697
      %s702 = sadd.s32 %s314, 1
      %s703 = ssub.s32 10, %s314
      %v704 = vstv %s702
      %v705 = vstv %s703
      %v706 = vsel %vm498, %v704, %v705
      %vm707 = vcmp.lt.s32.totalorder %v706, %v505
      %vm708 = vcmp.lt.s32.totalorder %v706, %v508
      %v709 = vsel %vm707, %v700, %v511
      %v710 = vsel %vm708, %v701, %v512
      %713 = vrot.lane.b32.xlu0 %v688, 64
      %v714 = vpop.permute.xlu0 %713
      %715 = vrot.lane.b32.xlu0 %v689, 64
      %v716 = vpop.permute.xlu0 %715
      %v719 = vsel %vm707, %v714, %v521
      %v720 = vsel %vm708, %v716, %v522
      %s721 = scalar_lea.vmem %s270, 32
      %v722 = vld [vmem:[%s721] sm:$0xff]
      %v723 = vld [vmem:[%s721 + $0x8] sm:$0xff]
      %v724 = vunpack.c.l.bf16 %v722
      %v725 = vunpack.c.h.bf16 %v722
      %v726 = vunpack.c.l.bf16 %v723
      %v727 = vunpack.c.h.bf16 %v723
      %v729 = vsel %vm325, %v709, 0
      %v732 = vsel %vm325, %v710, 0
      %734 = vmatpush.msra.mxu0 0.0
      %735 = vmatpush.msra.mxu0 0.0
      %736 = vmatpush.msra.mxu0 0.0
      %737 = vmatpush.msra.mxu0 0.0
      %738 = vmatpush.msra.mxu0 0.0
      %739 = vmatpush.msra.mxu0 0.0
      %740 = vmatpush.msra.mxu0 0.0
      %741 = vmatpush.msra.mxu0 0.0
      %742 = vmatpush.msra.mxu0 %v308
      %743 = vmatpush.msra.mxu0 %v306
      %744 = vmatpush.msra.mxu0 %v304
      %745 = vmatpush.msra.mxu0 %v302
      %746 = vmatpush.msra.mxu0 %v300
      %747 = vmatpush.msra.mxu0 %v298
      %748 = vmatpush.msra.mxu0 %v296
      %749 = vmatpush.msra.mxu0 %v294
      %750 = vmatmul.f32.gmra.mxu0 %v729
      %v751 = vpop.f32.mrf.mxu0
      %v752 = vadd.f32 0.0, %v751
      %753 = vmatmul.f32.gmra.mxu0 %v732
      %v754 = vpop.f32.mrf.mxu0
      %v755 = vadd.f32 0.0, %v754
      %756 = vdwg.mxu0
      %757 = vmatpush.msra.mxu0 0.0
      %758 = vmatpush.msra.mxu0 0.0
      %759 = vmatpush.msra.mxu0 0.0
      %760 = vmatpush.msra.mxu0 0.0
      %761 = vmatpush.msra.mxu0 0.0
      %762 = vmatpush.msra.mxu0 0.0
      %763 = vmatpush.msra.mxu0 0.0
      %764 = vmatpush.msra.mxu0 0.0
      %765 = vmatpush.msra.mxu0 %v309
      %766 = vmatpush.msra.mxu0 %v307
      %767 = vmatpush.msra.mxu0 %v305
      %768 = vmatpush.msra.mxu0 %v303
      %769 = vmatpush.msra.mxu0 %v301
      %770 = vmatpush.msra.mxu0 %v299
      %771 = vmatpush.msra.mxu0 %v297
      %772 = vmatpush.msra.mxu0 %v295
      %773 = vmatmul.f32.gmra.mxu0 %v729
      %v774 = vpop.f32.mrf.mxu0
      %v775 = vadd.f32 0.0, %v774
      %776 = vmatmul.f32.gmra.mxu0 %v732
      %v777 = vpop.f32.mrf.mxu0
      %v778 = vadd.f32 0.0, %v777
      %779 = vdwg.mxu0
      %v780 = vadd.f32 %v724, %v752
      %v781 = vadd.f32 %v725, %v775
      %v782 = vadd.f32 %v726, %v755
      %v783 = vadd.f32 %v727, %v778
      %v784 = vsub.f32 0.0, %v780
      %v785 = vsub.f32 0.0, %v781
      %v786 = vsub.f32 0.0, %v782
      %v787 = vsub.f32 0.0, %v783
      %v788 = vmul.f32 %v784, 1.442695
      %v789 = vpow.pop %v788
      %v790 = vmul.f32 %v785, 1.442695
      %v791 = vpow.pop %v790
      %v792 = vmul.f32 %v786, 1.442695
      %v793 = vpow.pop %v792
      %v794 = vmul.f32 %v787, 1.442695
      %v795 = vpow.pop %v794
      %v796 = vadd.f32 %v789, 1.0
      %v797 = vadd.f32 %v791, 1.0
      %v798 = vadd.f32 %v793, 1.0
      %v799 = vadd.f32 %v795, 1.0
      %v800 = vrcp.pop %v796
      %v801 = vmul.f32 %v796, %v800
      %v802 = vsub.f32 1.0, %v801
      %v803 = vmul.f32 %v800, %v802
      %v804 = vadd.f32 %v800, %v803
      %vm805 = vweird.f32 %v796
      %vm806 = vweird.f32 %v800
      %vm807 = vmor %vm805, %vm806
      %v808 = vsel %vm807, %v800, %v804
      %v809 = vand.u32 2147483647, %v796
      %vm810 = vcmp.eq.f32.partialorder %v809, 8.507059e+37
      %v811 = vand.u32 %v796, 2147483648
      %v812 = vor.u32 1.1754944e-38, %v811
      %v813 = vsel %vm810, %v812, %v808
      %v814 = vrcp.pop %v797
      %v815 = vmul.f32 %v797, %v814
      %v816 = vsub.f32 1.0, %v815
      %v817 = vmul.f32 %v814, %v816
      %v818 = vadd.f32 %v814, %v817
      %vm819 = vweird.f32 %v797
      %vm820 = vweird.f32 %v814
      %vm821 = vmor %vm819, %vm820
      %v822 = vsel %vm821, %v814, %v818
      %v823 = vand.u32 2147483647, %v797
      %vm824 = vcmp.eq.f32.partialorder %v823, 8.507059e+37
      %v825 = vand.u32 %v797, 2147483648
      %v826 = vor.u32 1.1754944e-38, %v825
      %v827 = vsel %vm824, %v826, %v822
      %v828 = vrcp.pop %v798
      %v829 = vmul.f32 %v798, %v828
      %v830 = vsub.f32 1.0, %v829
      %v831 = vmul.f32 %v828, %v830
      %v832 = vadd.f32 %v828, %v831
      %vm833 = vweird.f32 %v798
      %vm834 = vweird.f32 %v828
      %vm835 = vmor %vm833, %vm834
      %v836 = vsel %vm835, %v828, %v832
      %v837 = vand.u32 2147483647, %v798
      %vm838 = vcmp.eq.f32.partialorder %v837, 8.507059e+37
      %v839 = vand.u32 %v798, 2147483648
      %v840 = vor.u32 1.1754944e-38, %v839
      %v841 = vsel %vm838, %v840, %v836
      %v842 = vrcp.pop %v799
      %v843 = vmul.f32 %v799, %v842
      %v844 = vsub.f32 1.0, %v843
      %v845 = vmul.f32 %v842, %v844
      %v846 = vadd.f32 %v842, %v845
      %vm847 = vweird.f32 %v799
      %vm848 = vweird.f32 %v842
      %vm849 = vmor %vm847, %vm848
      %v850 = vsel %vm849, %v842, %v846
      %v851 = vand.u32 2147483647, %v799
      %vm852 = vcmp.eq.f32.partialorder %v851, 8.507059e+37
      %v853 = vand.u32 %v799, 2147483648
      %v854 = vor.u32 1.1754944e-38, %v853
      %v855 = vsel %vm852, %v854, %v850
      %v856 = vtanh.pop %v781
      %v857 = vtanh.pop %v783
      %860 = vrot.lane.b32.xlu0 %v719, 64
      %v861 = vpop.permute.xlu0 %860
      %862 = vrot.lane.b32.xlu0 %v720, 64
      %v863 = vpop.permute.xlu0 %862
      %v866 = vmul.f32 %v813, %v861
      %v867 = vmul.f32 %v841, %v863
      %870 = vrot.lane.b32.xlu0 %v856, 64
      %v871 = vpop.permute.xlu0 %870
      %872 = vrot.lane.b32.xlu0 %v857, 64
      %v873 = vpop.permute.xlu0 %872
      %v876 = vmul.f32 %v813, %v871
      %v877 = vmul.f32 %v841, %v873
      %880 = vrot.lane.b32.xlu0 %v876, 64
      %v881 = vpop.permute.xlu0 %880
      %882 = vrot.lane.b32.xlu0 %v877, 64
      %v883 = vpop.permute.xlu0 %882
      %v886 = vadd.f32 %v866, %v881
      %v887 = vadd.f32 %v867, %v883
      %v888 = vtanh.pop %v886
      %v889 = vtanh.pop %v887
      %892 = vrot.lane.b32.xlu0 %v888, 64
      %v893 = vpop.permute.xlu0 %892
      %894 = vrot.lane.b32.xlu0 %v889, 64
      %v895 = vpop.permute.xlu0 %894
      %v898 = vmul.f32 %v827, %v893
      %v899 = vmul.f32 %v855, %v895
      %s900 = sadd.s32 %s314, 2
      %s901 = ssub.s32 9, %s314
      %v902 = vstv %s900
      %v903 = vstv %s901
      %v904 = vsel %vm498, %v902, %v903
      %vm905 = vcmp.lt.s32.totalorder %v904, %v505
      %vm906 = vcmp.lt.s32.totalorder %v904, %v508
      %v907 = vsel %vm905, %v898, %v709
      %v908 = vsel %vm906, %v899, %v710
      %911 = vrot.lane.b32.xlu0 %v886, 64
      %v912 = vpop.permute.xlu0 %911
      %913 = vrot.lane.b32.xlu0 %v887, 64
      %v914 = vpop.permute.xlu0 %913
      %v917 = vsel %vm905, %v912, %v719
      %v918 = vsel %vm906, %v914, %v720
      %s919 = scalar_lea.vmem %s270, 48
      %v920 = vld [vmem:[%s919] sm:$0xff]
      %v921 = vld [vmem:[%s919 + $0x8] sm:$0xff]
      %v922 = vunpack.c.l.bf16 %v920
      %v923 = vunpack.c.h.bf16 %v920
      %v924 = vunpack.c.l.bf16 %v921
      %v925 = vunpack.c.h.bf16 %v921
      %v927 = vsel %vm325, %v907, 0
      %v930 = vsel %vm325, %v908, 0
      %932 = vmatpush.msra.mxu0 0.0
      %933 = vmatpush.msra.mxu0 0.0
      %934 = vmatpush.msra.mxu0 0.0
      %935 = vmatpush.msra.mxu0 0.0
      %936 = vmatpush.msra.mxu0 0.0
      %937 = vmatpush.msra.mxu0 0.0
      %938 = vmatpush.msra.mxu0 0.0
      %939 = vmatpush.msra.mxu0 0.0
      %940 = vmatpush.msra.mxu0 %v308
      %941 = vmatpush.msra.mxu0 %v306
      %942 = vmatpush.msra.mxu0 %v304
      %943 = vmatpush.msra.mxu0 %v302
      %944 = vmatpush.msra.mxu0 %v300
      %945 = vmatpush.msra.mxu0 %v298
      %946 = vmatpush.msra.mxu0 %v296
      %947 = vmatpush.msra.mxu0 %v294
      %948 = vmatmul.f32.gmra.mxu0 %v927
      %v949 = vpop.f32.mrf.mxu0
      %v950 = vadd.f32 0.0, %v949
      %951 = vmatmul.f32.gmra.mxu0 %v930
      %v952 = vpop.f32.mrf.mxu0
      %v953 = vadd.f32 0.0, %v952
      %954 = vdwg.mxu0
      %955 = vmatpush.msra.mxu0 0.0
      %956 = vmatpush.msra.mxu0 0.0
      %957 = vmatpush.msra.mxu0 0.0
      %958 = vmatpush.msra.mxu0 0.0
      %959 = vmatpush.msra.mxu0 0.0
      %960 = vmatpush.msra.mxu0 0.0
      %961 = vmatpush.msra.mxu0 0.0
      %962 = vmatpush.msra.mxu0 0.0
      %963 = vmatpush.msra.mxu0 %v309
      %964 = vmatpush.msra.mxu0 %v307
      %965 = vmatpush.msra.mxu0 %v305
      %966 = vmatpush.msra.mxu0 %v303
      %967 = vmatpush.msra.mxu0 %v301
      %968 = vmatpush.msra.mxu0 %v299
      %969 = vmatpush.msra.mxu0 %v297
      %970 = vmatpush.msra.mxu0 %v295
      %971 = vmatmul.f32.gmra.mxu0 %v927
      %v972 = vpop.f32.mrf.mxu0
      %v973 = vadd.f32 0.0, %v972
      %974 = vmatmul.f32.gmra.mxu0 %v930
      %v975 = vpop.f32.mrf.mxu0
      %v976 = vadd.f32 0.0, %v975
      %977 = vdwg.mxu0
      %v978 = vadd.f32 %v922, %v950
      %v979 = vadd.f32 %v923, %v973
      %v980 = vadd.f32 %v924, %v953
      %v981 = vadd.f32 %v925, %v976
      %v982 = vsub.f32 0.0, %v978
      %v983 = vsub.f32 0.0, %v979
      %v984 = vsub.f32 0.0, %v980
      %v985 = vsub.f32 0.0, %v981
      %v986 = vmul.f32 %v982, 1.442695
      %v987 = vpow.pop %v986
      %v988 = vmul.f32 %v983, 1.442695
      %v989 = vpow.pop %v988
      %v990 = vmul.f32 %v984, 1.442695
      %v991 = vpow.pop %v990
      %v992 = vmul.f32 %v985, 1.442695
      %v993 = vpow.pop %v992
      %v994 = vadd.f32 %v987, 1.0
      %v995 = vadd.f32 %v989, 1.0
      %v996 = vadd.f32 %v991, 1.0
      %v997 = vadd.f32 %v993, 1.0
      %v998 = vrcp.pop %v994
      %v999 = vmul.f32 %v994, %v998
      %v1000 = vsub.f32 1.0, %v999
      %v1001 = vmul.f32 %v998, %v1000
      %v1002 = vadd.f32 %v998, %v1001
      %vm1003 = vweird.f32 %v994
      %vm1004 = vweird.f32 %v998
      %vm1005 = vmor %vm1003, %vm1004
      %v1006 = vsel %vm1005, %v998, %v1002
      %v1007 = vand.u32 2147483647, %v994
      %vm1008 = vcmp.eq.f32.partialorder %v1007, 8.507059e+37
      %v1009 = vand.u32 %v994, 2147483648
      %v1010 = vor.u32 1.1754944e-38, %v1009
      %v1011 = vsel %vm1008, %v1010, %v1006
      %v1012 = vrcp.pop %v995
      %v1013 = vmul.f32 %v995, %v1012
      %v1014 = vsub.f32 1.0, %v1013
      %v1015 = vmul.f32 %v1012, %v1014
      %v1016 = vadd.f32 %v1012, %v1015
      %vm1017 = vweird.f32 %v995
      %vm1018 = vweird.f32 %v1012
      %vm1019 = vmor %vm1017, %vm1018
      %v1020 = vsel %vm1019, %v1012, %v1016
      %v1021 = vand.u32 2147483647, %v995
      %vm1022 = vcmp.eq.f32.partialorder %v1021, 8.507059e+37
      %v1023 = vand.u32 %v995, 2147483648
      %v1024 = vor.u32 1.1754944e-38, %v1023
      %v1025 = vsel %vm1022, %v1024, %v1020
      %v1026 = vrcp.pop %v996
      %v1027 = vmul.f32 %v996, %v1026
      %v1028 = vsub.f32 1.0, %v1027
      %v1029 = vmul.f32 %v1026, %v1028
      %v1030 = vadd.f32 %v1026, %v1029
      %vm1031 = vweird.f32 %v996
      %vm1032 = vweird.f32 %v1026
      %vm1033 = vmor %vm1031, %vm1032
      %v1034 = vsel %vm1033, %v1026, %v1030
      %v1035 = vand.u32 2147483647, %v996
      %vm1036 = vcmp.eq.f32.partialorder %v1035, 8.507059e+37
      %v1037 = vand.u32 %v996, 2147483648
      %v1038 = vor.u32 1.1754944e-38, %v1037
      %v1039 = vsel %vm1036, %v1038, %v1034
      %v1040 = vrcp.pop %v997
      %v1041 = vmul.f32 %v997, %v1040
      %v1042 = vsub.f32 1.0, %v1041
      %v1043 = vmul.f32 %v1040, %v1042
      %v1044 = vadd.f32 %v1040, %v1043
      %vm1045 = vweird.f32 %v997
      %vm1046 = vweird.f32 %v1040
      %vm1047 = vmor %vm1045, %vm1046
      %v1048 = vsel %vm1047, %v1040, %v1044
      %v1049 = vand.u32 2147483647, %v997
      %vm1050 = vcmp.eq.f32.partialorder %v1049, 8.507059e+37
      %v1051 = vand.u32 %v997, 2147483648
      %v1052 = vor.u32 1.1754944e-38, %v1051
      %v1053 = vsel %vm1050, %v1052, %v1048
      %v1054 = vtanh.pop %v979
      %v1055 = vtanh.pop %v981
      %1058 = vrot.lane.b32.xlu0 %v917, 64
      %v1059 = vpop.permute.xlu0 %1058
      %1060 = vrot.lane.b32.xlu0 %v918, 64
      %v1061 = vpop.permute.xlu0 %1060
      %v1064 = vmul.f32 %v1011, %v1059
      %v1065 = vmul.f32 %v1039, %v1061
      %1068 = vrot.lane.b32.xlu0 %v1054, 64
      %v1069 = vpop.permute.xlu0 %1068
      %1070 = vrot.lane.b32.xlu0 %v1055, 64
      %v1071 = vpop.permute.xlu0 %1070
      %v1074 = vmul.f32 %v1011, %v1069
      %v1075 = vmul.f32 %v1039, %v1071
      %1078 = vrot.lane.b32.xlu0 %v1074, 64
      %v1079 = vpop.permute.xlu0 %1078
      %1080 = vrot.lane.b32.xlu0 %v1075, 64
      %v1081 = vpop.permute.xlu0 %1080
      %v1084 = vadd.f32 %v1064, %v1079
      %v1085 = vadd.f32 %v1065, %v1081
      %v1086 = vtanh.pop %v1084
      %v1087 = vtanh.pop %v1085
      %1090 = vrot.lane.b32.xlu0 %v1086, 64
      %v1091 = vpop.permute.xlu0 %1090
      %1092 = vrot.lane.b32.xlu0 %v1087, 64
      %v1093 = vpop.permute.xlu0 %1092
      %v1096 = vmul.f32 %v1025, %v1091
      %v1097 = vmul.f32 %v1053, %v1093
      %s1098 = sadd.s32 %s314, 3
      %s1099 = ssub.s32 8, %s314
      %v1100 = vstv %s1098
      %v1101 = vstv %s1099
      %v1102 = vsel %vm498, %v1100, %v1101
      %vm1103 = vcmp.lt.s32.totalorder %v1102, %v505
      %vm1104 = vcmp.lt.s32.totalorder %v1102, %v508
      %v1105 = vsel %vm1103, %v1096, %v907
      %v1106 = vsel %vm1104, %v1097, %v908
      %1109 = vrot.lane.b32.xlu0 %v1084, 64
      %v1110 = vpop.permute.xlu0 %1109
      %1111 = vrot.lane.b32.xlu0 %v1085, 64
      %v1112 = vpop.permute.xlu0 %1111
      %v1115 = vsel %vm1103, %v1110, %v917
      %v1116 = vsel %vm1104, %v1112, %v918
      %1117 = vst.msk [vmem:[#allocation2] sm:$0xff] %vm325, %v1105
      %1118 = vst.msk [vmem:[#allocation2 + $0x8] sm:$0xff] %vm325, %v1106
      %1119 = vst.msk [vmem:[#allocation3] sm:$0xff] %vm325, %v1115
      %1120 = vst.msk [vmem:[#allocation3 + $0x8] sm:$0xff] %vm325, %v1116
      %p1121 = scmp.eq.s32.totalorder %s22, 2
      // Predicated region
      $region45: #{_lambda_.1} parent=39 // pred_check
        %p1122 = pneg %p1121
      $region46: #{_lambda_.1} parent=39 // pred_check_branch
        %1124 = sbr.rel (%p1122) target = $region48
      $region47: #{_lambda_.1} parent=39 // pred_region
        %v1125 = vld [vmem:[%s3] sm:$0x1]
        %v1127 = vperm.slane %v1125, 0
        %v1129 = vmul.f32 %v1105, %v1127
        %v1130 = vmul.f32 %v1106, %v1127
        %v1131 = vsel %vm325, %v1129, 0.0
        %1132 = vadd.xlane.f32.xlu0 %v1131
        %v1133 = vpop.xlane.xlu0 %1132
        %v1134 = vsel %vm325, %v1130, 0.0
        %1135 = vadd.xlane.f32.xlu0 %v1134
        %v1136 = vpop.xlane.xlu0 %1135
        %s1137 = sld [smem:[#allocation4]]
        %v1138 = vstv %s1137
        %v1139 = vadd.f32 %v1133, %v1138
        %v1140 = vadd.f32 %v1136, %v1138
        %v1141 = vsub.f32 0.0, %v1139
        %v1142 = vsub.f32 0.0, %v1140
        %v1143 = vmul.f32 %v1141, 1.442695
        %v1144 = vpow.pop %v1143
        %v1145 = vmul.f32 %v1142, 1.442695
        %v1146 = vpow.pop %v1145
        %v1147 = vadd.f32 %v1144, 1.0
        %v1148 = vadd.f32 %v1146, 1.0
        %v1149 = vrcp.pop %v1147
        %v1150 = vmul.f32 %v1147, %v1149
        %v1151 = vsub.f32 1.0, %v1150
        %v1152 = vmul.f32 %v1149, %v1151
        %v1153 = vadd.f32 %v1149, %v1152
        %vm1154 = vweird.f32 %v1147
        %vm1155 = vweird.f32 %v1149
        %vm1156 = vmor %vm1154, %vm1155
        %v1157 = vsel %vm1156, %v1149, %v1153
        %v1158 = vand.u32 2147483647, %v1147
        %vm1159 = vcmp.eq.f32.partialorder %v1158, 8.507059e+37
        %v1160 = vand.u32 %v1147, 2147483648
        %v1161 = vor.u32 1.1754944e-38, %v1160
        %v1162 = vsel %vm1159, %v1161, %v1157
        %v1163 = vrcp.pop %v1148
        %v1164 = vmul.f32 %v1148, %v1163
        %v1165 = vsub.f32 1.0, %v1164
        %v1166 = vmul.f32 %v1163, %v1165
        %v1167 = vadd.f32 %v1163, %v1166
        %vm1168 = vweird.f32 %v1148
        %vm1169 = vweird.f32 %v1163
        %vm1170 = vmor %vm1168, %vm1169
        %v1171 = vsel %vm1170, %v1163, %v1167
        %v1172 = vand.u32 2147483647, %v1148
        %vm1173 = vcmp.eq.f32.partialorder %v1172, 8.507059e+37
        %v1174 = vand.u32 %v1148, 2147483648
        %v1175 = vor.u32 1.1754944e-38, %v1174
        %v1176 = vsel %vm1173, %v1175, %v1171
        %vm1177 = vcmask 7168
        %1178 = vst.msk [vmem:[%s283] sm:$0xff] %vm1177, %v1162
        %1179 = vst.msk [vmem:[%s283 + $0x8] sm:$0xff] %vm1177, %v1176
      $region48: #{_lambda_.1} parent=39 // pred_fallthru
        _
      %s1180 = smul.u32 2, %s21
      %p1181 = scmp.lt.s32.totalorder %s1180, 1
      %s1182 = scalar_select %p1181, %s1180, 1
      %s1183 = smul.addr %s1182, 8
      %s1184 = scalar_lea.vmem %s5, %s1183
      // Predicated region
      $region49: #{_lambda_.1} parent=39 // pred_check
        %p1185 = pneg %p164
      $region50: #{_lambda_.1} parent=39 // pred_check_branch
        %1187 = sbr.rel (%p1185) target = $region52
      $region51: #{_lambda_.1} parent=39 // pred_region
        %s1188 = smul.u32 2, %s21
      $region52: #{_lambda_.1} parent=39 // pred_fallthru
        _
      // Predicated region
      $region53: #{_lambda_.1} parent=39 // pred_check
        %p1189 = pneg %p164
      $region54: #{_lambda_.1} parent=39 // pred_check_branch
        %1191 = sbr.rel (%p1189) target = $region56
      $region55: #{_lambda_.1} parent=39 // pred_region
        %s1192 = smul.u32 2, %s21
        %p1193 = scmp.lt.s32.totalorder %s1192, 1
        %s1194 = scalar_select %p1193, %s1192, 1
        %s1195 = smul.addr %s1194, 8
        %s1196 = scalar_lea.vmem %s5, %s1195
      $region56: #{_lambda_.1} parent=39 // pred_fallthru
        _
    $region40: #{_lambda_.1} parent=5 // pred_fallthru
      _
    %p1197 = scmp.le.s32.totalorder 2, %s12
    // Predicated region
    $region57: #{_lambda_.1} parent=5 // pred_check
      %p1198 = pneg %p1197
    $region58: #{_lambda_.1} parent=5 // pred_check_branch
      %1200 = sbr.rel (%p1198) target = $region60
    $region59: #{_lambda_.1} parent=5 // pred_region
      %s1201 = ssub.s32 %s12, 2
    $region60: #{_lambda_.1} parent=5 // pred_fallthru
      _
  $region6: #{_lambda_.1} parent=0 // loop_footer
    %s16 = sadd.s32 1, %s12
  $region7: #{_lambda_.1} parent=0 // loop_footer_branch
    %11 = sbr.rel target = $region3
  $region8: #{_lambda_.1} parent=0 // loop_exit
    _

</llo_original>
